<compile_context>
chip_gen: v7x
topology: tpu7x:2x2x1
jax: 0.10.0
libtpu: 0.0.40
codegen_flags: <defaults>
</compile_context>

<pallas_src>
import math
import functools

import jax
import jax.numpy as jnp
from jax.experimental import pallas as pl
from jax.experimental.pallas import tpu as pltpu

_VMEM_LIMIT = 48 * 1024 * 1024  # fits v7x 64 MiB with headroom; > v5e/v6e defaults


# ------------------------------ small helpers -------------------------------

def _round_up(x, m):
    return ((x + m - 1) // m) * m


def _pad2(x, rows, cols):
    R, C = x.shape
    if R == rows and C == cols:
        return x
    return jnp.pad(x, ((0, rows - R), (0, cols - C)))


# --------------------------- tiled linear (+bias) ----------------------------

def _linear_kernel(x_ref, w_ref, b_ref, o_ref, acc_ref, *, apply_relu):
    @pl.when(pl.program_id(2) == 0)
    def _():
        acc_ref[...] = jnp.zeros_like(acc_ref)

    acc_ref[...] += jnp.dot(x_ref[...], w_ref[...],
                            preferred_element_type=jnp.float32)

    @pl.when(pl.program_id(2) == pl.num_programs(2) - 1)
    def _():
        y = acc_ref[...] + b_ref[...]
        if apply_relu:
            y = jnp.maximum(y, 0.0)
        o_ref[...] = y.astype(o_ref.dtype)


def linear(x, w, b, *, apply_relu=False, tm=256, tn=512, tk=512):
    """y = x @ w + b, tiled over (M, N, K) with K-accumulation in VMEM."""
    M, K = x.shape
    N = w.shape[1]
    tm = min(tm, _round_up(M, 8))
    tn = min(tn, _round_up(N, 128))
    tk = min(tk, _round_up(K, 128))
    Mp, Np, Kp = _round_up(M, tm), _round_up(N, tn), _round_up(K, tk)

    xp = _pad2(x, Mp, Kp)
    wp = _pad2(w, Kp, Np)
    bp = _pad2(b.reshape(1, N), 1, Np)

    out = pl.pallas_call(
        functools.partial(_linear_kernel, apply_relu=apply_relu),
        out_shape=jax.ShapeDtypeStruct((Mp, Np), x.dtype),
        grid=(Mp // tm, Np // tn, Kp // tk),
        in_specs=[
            pl.BlockSpec((tm, tk), lambda i, j, k: (i, k)),
            pl.BlockSpec((tk, tn), lambda i, j, k: (k, j)),
            pl.BlockSpec((1, tn), lambda i, j, k: (0, j)),
        ],
        out_specs=pl.BlockSpec((tm, tn), lambda i, j, k: (i, j)),
        scratch_shapes=[pltpu.VMEM((tm, tn), jnp.float32)],
        compiler_params=pltpu.CompilerParams(
            dimension_semantics=("parallel", "parallel", "arbitrary"),
            vmem_limit_bytes=_VMEM_LIMIT),
    )(xp, wp, bp)
    if (Mp, Np) != (M, N):
        out = out[:M, :N]
    return out


# ---------------- matmul + bias + residual add + LayerNorm -------------------

def _linear_add_ln_kernel(x_ref, w_ref, b_ref, r_ref, g_ref, bb_ref, o_ref, *, eps):
    y = jnp.dot(x_ref[...], w_ref[...], preferred_element_type=jnp.float32)
    y = y + b_ref[...] + r_ref[...].astype(jnp.float32)
    mean = jnp.mean(y, axis=-1, keepdims=True)
    var = jnp.mean(jnp.square(y - mean), axis=-1, keepdims=True)
    xhat = (y - mean) * jax.lax.rsqrt(var + eps)
    o_ref[...] = (xhat * g_ref[...] + bb_ref[...]).astype(o_ref.dtype)


def linear_add_layernorm(x, w, b, resid, gamma, beta, *, tm=256, eps=1e-5):
    """LayerNorm(resid + (x @ w + b)); full feature dim kept per tile for the LN reduce."""
    M, K = x.shape
    N = w.shape[1]
    tm = min(tm, _round_up(M, 8))
    Mp = _round_up(M, tm)
    xp = _pad2(x, Mp, K)
    rp = _pad2(resid, Mp, N)

    out = pl.pallas_call(
        functools.partial(_linear_add_ln_kernel, eps=eps),
        out_shape=jax.ShapeDtypeStruct((Mp, N), x.dtype),
        grid=(Mp // tm,),
        in_specs=[
            pl.BlockSpec((tm, K), lambda i: (i, 0)),
            pl.BlockSpec((K, N), lambda i: (0, 0)),
            pl.BlockSpec((1, N), lambda i: (0, 0)),
            pl.BlockSpec((tm, N), lambda i: (i, 0)),
            pl.BlockSpec((1, N), lambda i: (0, 0)),
            pl.BlockSpec((1, N), lambda i: (0, 0)),
        ],
        out_specs=pl.BlockSpec((tm, N), lambda i: (i, 0)),
        compiler_params=pltpu.CompilerParams(
            dimension_semantics=("parallel",),
            vmem_limit_bytes=_VMEM_LIMIT),
    )(xp, w, b.reshape(1, N), rp, gamma.reshape(1, N), beta.reshape(1, N))
    if Mp != M:
        out = out[:M]
    return out


# -------- fused FFN: relu(x@W1+b1)@W2 + b2 + residual -> LayerNorm -----------

def _ffn_ln_kernel(x_ref, w1_ref, b1_ref, w2_ref, b2_ref, r_ref, g_ref, bb_ref,
                   o_ref, acc_ref, *, eps):
    f = pl.program_id(1)

    @pl.when(f == 0)
    def _():
        acc_ref[...] = jnp.zeros_like(acc_ref)

    h = jnp.dot(x_ref[...], w1_ref[...], preferred_element_type=jnp.float32)
    h = jnp.maximum(h + b1_ref[...], 0.0)
    acc_ref[...] += jnp.dot(h, w2_ref[...], preferred_element_type=jnp.float32)

    @pl.when(f == pl.num_programs(1) - 1)
    def _():
        y = acc_ref[...] + b2_ref[...] + r_ref[...].astype(jnp.float32)
        mean = jnp.mean(y, axis=-1, keepdims=True)
        var = jnp.mean(jnp.square(y - mean), axis=-1, keepdims=True)
        xhat = (y - mean) * jax.lax.rsqrt(var + eps)
        o_ref[...] = (xhat * g_ref[...] + bb_ref[...]).astype(o_ref.dtype)


def ffn_add_layernorm(x, w1, b1, w2, b2, resid, gamma, beta,
                      *, tm=256, tf=512, eps=1e-5):
    M, D = x.shape
    F = w1.shape[1]
    tm = min(tm, _round_up(M, 8))
    tf = min(tf, _round_up(F, 128))
    Mp, Fp = _round_up(M, tm), _round_up(F, tf)

    xp = _pad2(x, Mp, D)
    rp = _pad2(resid, Mp, D)
    w1p = _pad2(w1, D, Fp)
    b1p = _pad2(b1.reshape(1, F), 1, Fp)
    w2p = _pad2(w2, Fp, D)

    out = pl.pallas_call(
        functools.partial(_ffn_ln_kernel, eps=eps),
        out_shape=jax.ShapeDtypeStruct((Mp, D), x.dtype),
        grid=(Mp // tm, Fp // tf),
        in_specs=[
            pl.BlockSpec((tm, D), lambda i, f: (i, 0)),
            pl.BlockSpec((D, tf), lambda i, f: (0, f)),
            pl.BlockSpec((1, tf), lambda i, f: (0, f)),
            pl.BlockSpec((tf, D), lambda i, f: (f, 0)),
            pl.BlockSpec((1, D), lambda i, f: (0, 0)),
            pl.BlockSpec((tm, D), lambda i, f: (i, 0)),
            pl.BlockSpec((1, D), lambda i, f: (0, 0)),
            pl.BlockSpec((1, D), lambda i, f: (0, 0)),
        ],
        out_specs=pl.BlockSpec((tm, D), lambda i, f: (i, 0)),
        scratch_shapes=[pltpu.VMEM((tm, D), jnp.float32)],
        compiler_params=pltpu.CompilerParams(
            dimension_semantics=("parallel", "arbitrary"),
            vmem_limit_bytes=_VMEM_LIMIT),
    )(xp, w1p, b1p, w2p, b2.reshape(1, D), rp,
      gamma.reshape(1, D), beta.reshape(1, D))
    if Mp != M:
        out = out[:M]
    return out


# -------------------- embedding scale + positional encoding ------------------

def _scale_pe_kernel(x_ref, pe_ref, o_ref, *, scale):
    # x: (ts, B, D); pe: (ts, D) broadcast over B inside the kernel
    o_ref[...] = (x_ref[...] * scale + pe_ref[...][:, None, :]).astype(o_ref.dtype)


def scale_add_pe(emb, pe, scale, *, ts=256):
    S, B, D = emb.shape
    ts = min(ts, S)
    Sp = _round_up(S, ts)
    if Sp != S:
        emb = jnp.pad(emb, ((0, Sp - S), (0, 0), (0, 0)))
        pe = jnp.pad(pe, ((0, Sp - S), (0, 0)))
    out = pl.pallas_call(
        functools.partial(_scale_pe_kernel, scale=scale),
        out_shape=jax.ShapeDtypeStruct((Sp, B, D), emb.dtype),
        grid=(Sp // ts,),
        in_specs=[
            pl.BlockSpec((ts, B, D), lambda i: (i, 0, 0)),
            pl.BlockSpec((ts, D), lambda i: (i, 0)),
        ],
        out_specs=pl.BlockSpec((ts, B, D), lambda i: (i, 0, 0)),
        compiler_params=pltpu.CompilerParams(dimension_semantics=("parallel",)),
    )(emb, pe)
    return out[:S] if Sp != S else out


# ------------------------------- attention -----------------------------------

def _attn_kernel(q_ref, k_ref, v_ref, m_ref, o_ref, *, scale):
    # one batch element, all heads: q/k/v are (H, S, dk); m is (S, S) additive mask
    q = q_ref[...]
    k = k_ref[...]
    v = v_ref[...]
    s = jnp.einsum('hqd,hkd->hqk', q, k, preferred_element_type=jnp.float32)
    s = s * scale + m_ref[...][None, :, :]
    s = s - jnp.max(s, axis=-1, keepdims=True)
    p = jnp.exp(s)
    denom = jnp.sum(p, axis=-1, keepdims=True)
    p = p * pl.reciprocal(denom, approx=True)  # EUP slot, ~free
    o = jnp.einsum('hqk,hkd->hqd', p, v, preferred_element_type=jnp.float32)
    o_ref[...] = o.astype(o_ref.dtype)


def mha_attention(q, k, v, mask, scale):
    # q, k, v: (B, H, S, dk); mask: (S, S)
    B, H, S, dk = q.shape
    head_spec = pl.BlockSpec((None, H, S, dk), lambda b: (b, 0, 0, 0))
    return pl.pallas_call(
        functools.partial(_attn_kernel, scale=scale),
        out_shape=jax.ShapeDtypeStruct((B, H, S, dk), q.dtype),
        grid=(B,),
        in_specs=[head_spec, head_spec, head_spec,
                  pl.BlockSpec((S, S), lambda b: (0, 0))],
        out_specs=head_spec,
        compiler_params=pltpu.CompilerParams(dimension_semantics=("parallel",)),
    )(q, k, v, mask)


# --------------------------- model forward (glue) ----------------------------

def make_positional_encoding(max_len, d_model):
    position = jnp.arange(max_len, dtype=jnp.float32)[:, None]
    div_term = jnp.exp(jnp.arange(0, d_model, 2, dtype=jnp.float32)
                       * (-math.log(10000.0) / d_model))
    pe = jnp.zeros((max_len, d_model), dtype=jnp.float32)
    pe = pe.at[:, 0::2].set(jnp.sin(position * div_term))
    pe = pe.at[:, 1::2].set(jnp.cos(position * div_term))
    return pe  # (max_len, d_model)


def generate_square_subsequent_mask(sz):
    # 0 on/below diagonal, -inf above (matches the PyTorch reference)
    allowed = jnp.tril(jnp.ones((sz, sz), dtype=bool))
    return jnp.where(allowed, 0.0, -jnp.inf).astype(jnp.float32)


def encoder_layer_forward(x, mask, p, nhead):
    # PyTorch TransformerEncoderLayer (post-LN, ReLU), dropout = identity
    S, B, D = x.shape
    dk = D // nhead
    xf = x.reshape(S * B, D)

    # fused Q/K/V projection (one tiled matmul against the (D, 3D) weight)
    qkv = linear(xf, p["wqkv"], p["bqkv"])                              # (S*B, 3D)
    qkv = qkv.reshape(S, B, 3, nhead, dk).transpose(2, 1, 3, 0, 4)      # (3, B, H, S, dk)
    q, k, v = qkv[0], qkv[1], qkv[2]

    attn = mha_attention(q, k, v, mask, 1.0 / math.sqrt(dk))            # (B, H, S, dk)
    attn = attn.transpose(2, 0, 1, 3).reshape(S * B, D)                 # (S*B, D)

    # out-proj + residual + LayerNorm fused
    x1 = linear_add_layernorm(attn, p["wo"], p["bo"], xf, p["ln1_g"], p["ln1_b"])

    # FFN (W1 -> ReLU -> W2) + residual + LayerNorm fused
    x2 = ffn_add_layernorm(x1, p["w1"], p["b1"], p["w2"], p["b2"],
                           x1, p["ln2_g"], p["ln2_b"])
    return x2.reshape(S, B, D)


def transformer_forward(params, src, src_mask, *, ninp, nhead):
    S, B = src.shape
    D = ninp
    emb = jnp.take(params["emb"], src, axis=0)          # (S, B, D) -- XLA gather
    x = scale_add_pe(emb, params["pe"][:S], math.sqrt(D))
    for lp in params["layers"]:
        x = encoder_layer_forward(x, src_mask, lp, nhead)
    logits = linear(x.reshape(S * B, D), params["dec_w"], params["dec_b"])
    return logits.reshape(S, B, -1)


# ------------------------------ parameter init --------------------------------

def init_params(key, ntoken, ninp, nhead, nhid, nlayers, max_len=5000):
    def uni(k, shape, scale=0.1):
        return jax.random.uniform(k, shape, jnp.float32, -scale, scale)

    keys = jax.random.split(key, 2 + nlayers)
    params = {
        "emb": uni(keys[0], (ntoken, ninp)),
        "pe": make_positional_encoding(max_len, ninp),
        "dec_w": uni(keys[1], (ninp, ntoken)),
        "dec_b": jnp.zeros((ntoken,), jnp.float32),
        "layers": [],
    }
    for li in range(nlayers):
        lk = jax.random.split(keys[2 + li], 4)
        params["layers"].append({
            "wqkv": uni(lk[0], (ninp, 3 * ninp)),
            "bqkv": jnp.zeros((3 * ninp,), jnp.float32),
            "wo": uni(lk[1], (ninp, ninp)), "bo": jnp.zeros((ninp,), jnp.float32),
            "ln1_g": jnp.ones((ninp,), jnp.float32), "ln1_b": jnp.zeros((ninp,), jnp.float32),
            "w1": uni(lk[2], (ninp, nhid)), "b1": jnp.zeros((nhid,), jnp.float32),
            "w2": uni(lk[3], (nhid, ninp)), "b2": jnp.zeros((ninp,), jnp.float32),
            "ln2_g": jnp.ones((ninp,), jnp.float32), "ln2_b": jnp.zeros((ninp,), jnp.float32),
        })
    return params


# ----------------------------------- main --------------------------------------

if __name__ == "__main__":
    NTOKEN, NINP, NHEAD, NHID, NLAYERS = 50, 32, 4, 64, 2
    S, B = 8, 2

    key = jax.random.PRNGKey(0)
    pkey, dkey = jax.random.split(key)
    params = init_params(pkey, NTOKEN, NINP, NHEAD, NHID, NLAYERS)

    src = jax.random.randint(dkey, (S, B), 0, NTOKEN, dtype=jnp.int32)
    src_mask = generate_square_subsequent_mask(S)

    fwd = jax.jit(functools.partial(transformer_forward, ninp=NINP, nhead=NHEAD))
    out = fwd(params, src, src_mask)
    out = jax.block_until_ready(out)

    assert out.shape == (S, B, NTOKEN), out.shape
    assert bool(jnp.all(jnp.isfinite(out)))
    print("KERNEL_OK")
</pallas_src>

<mosaic_0001>
module attributes {stable_mosaic.version = 11 : i64} {
  func.func @_scale_pe_kernel(%arg0: i32, %arg1: memref<8x2x32xf32, #tpu.memory_space<vmem>>, %arg2: memref<8x32xf32, #tpu.memory_space<vmem>>, %arg3: memref<8x2x32xf32, #tpu.memory_space<vmem>>) attributes {dimension_semantics = [#tpu.dimension_semantics<parallel>], iteration_bounds = array<i64: 1>, scalar_prefetch = 0 : i64, scratch_operands = 0 : i64, tpu.core_type = #tpu.core_type<tc>, window_params = [{transform_indices = @transform_0, window_bounds = array<i64: 8, 2, 32>}, {transform_indices = @transform_1, window_bounds = array<i64: 8, 32>}, {transform_indices = @transform_2, window_bounds = array<i64: 8, 2, 32>}]} {
    %c0 = arith.constant 0 : index
    %c0_0 = arith.constant 0 : index
    %c0_1 = arith.constant 0 : index
    %0 = vector.load %arg1[%c0, %c0_0, %c0_1] : memref<8x2x32xf32, #tpu.memory_space<vmem>>, vector<8x2x32xf32>
    %cst = arith.constant 5.65685415 : f32
    %1 = vector.broadcast %cst : f32 to vector<8x2x32xf32>
    %2 = arith.mulf %0, %1 : vector<8x2x32xf32>
    %c0_2 = arith.constant 0 : index
    %c0_3 = arith.constant 0 : index
    %3 = vector.load %arg2[%c0_2, %c0_3] : memref<8x32xf32, #tpu.memory_space<vmem>>, vector<8x32xf32>
    %4 = vector.shape_cast %3 : vector<8x32xf32> to vector<8x1x32xf32>
    %5 = vector.broadcast %4 : vector<8x1x32xf32> to vector<8x2x32xf32>
    %6 = arith.addf %2, %5 : vector<8x2x32xf32>
    %c0_4 = arith.constant 0 : index
    %c0_5 = arith.constant 0 : index
    %c0_6 = arith.constant 0 : index
    %7 = vector.load %arg3[%c0_4, %c0_5, %c0_6] : memref<8x2x32xf32, #tpu.memory_space<vmem>>, vector<8x2x32xf32>
    tpu.vector_store %arg3[%c0_4, %c0_5, %c0_6], %6 {strides = array<i32>} : memref<8x2x32xf32, #tpu.memory_space<vmem>>, vector<8x2x32xf32>,
    return
  }
  func.func @transform_0(%arg0: i32) -> (i32, i32, i32) {
    %c0_i32 = arith.constant 0 : i32
    %c0_i32_0 = arith.constant 0 : i32
    %c0_i32_1 = arith.constant 0 : i32
    return %arg0, %c0_i32, %c0_i32_0 : i32, i32, i32
  }
  func.func @transform_1(%arg0: i32) -> (i32, i32) {
    %c0_i32 = arith.constant 0 : i32
    %c0_i32_0 = arith.constant 0 : i32
    return %arg0, %c0_i32 : i32, i32
  }
  func.func @transform_2(%arg0: i32) -> (i32, i32, i32) {
    %c0_i32 = arith.constant 0 : i32
    %c0_i32_0 = arith.constant 0 : i32
    %c0_i32_1 = arith.constant 0 : i32
    return %arg0, %c0_i32, %c0_i32_0 : i32, i32, i32
  }
}

module attributes {stable_mosaic.version = 11 : i64} {
  func.func @_linear_kernel(%arg0: i32, %arg1: i32, %arg2: i32, %arg3: memref<16x128xf32, #tpu.memory_space<vmem>>, %arg4: memref<128x128xf32, #tpu.memory_space<vmem>>, %arg5: memref<1x128xf32, #tpu.memory_space<vmem>>, %arg6: memref<16x128xf32, #tpu.memory_space<vmem>>, %arg7: memref<16x128xf32, #tpu.memory_space<vmem>>) attributes {dimension_semantics = [#tpu.dimension_semantics<parallel>, #tpu.dimension_semantics<parallel>, #tpu.dimension_semantics<arbitrary>], iteration_bounds = array<i64: 1, 1, 1>, scalar_prefetch = 0 : i64, scratch_operands = 1 : i64, tpu.core_type = #tpu.core_type<tc>, window_params = [{transform_indices = @transform_0, window_bounds = array<i64: 16, 128>}, {transform_indices = @transform_1, window_bounds = array<i64: 128, 128>}, {transform_indices = @transform_2, window_bounds = array<i64: 1, 128>}, {transform_indices = @transform_3, window_bounds = array<i64: 16, 128>}]} {
    %c0_i32 = arith.constant 0 : i32
    %0 = arith.cmpi eq, %arg2, %c0_i32 : i32
    %1 = arith.extui %0 : i1 to i32
    %c0_i32_0 = arith.constant 0 : i32
    %2 = arith.cmpi ne, %1, %c0_i32_0 : i32
    scf.if %2 {
      %cst_10 = arith.constant 0.000000e+00 : f32
      %12 = vector.broadcast %cst_10 : f32 to vector<16x128xf32>
      %c0_11 = arith.constant 0 : index
      %c0_12 = arith.constant 0 : index
      %13 = vector.load %arg7[%c0_11, %c0_12] : memref<16x128xf32, #tpu.memory_space<vmem>>, vector<16x128xf32>
      tpu.vector_store %arg7[%c0_11, %c0_12], %12 {strides = array<i32>} : memref<16x128xf32, #tpu.memory_space<vmem>>, vector<16x128xf32>,
    } else {
    }
    %c0 = arith.constant 0 : index
    %c0_1 = arith.constant 0 : index
    %3 = vector.load %arg7[%c0, %c0_1] : memref<16x128xf32, #tpu.memory_space<vmem>>, vector<16x128xf32>
    %c0_2 = arith.constant 0 : index
    %c0_3 = arith.constant 0 : index
    %4 = vector.load %arg3[%c0_2, %c0_3] : memref<16x128xf32, #tpu.memory_space<vmem>>, vector<16x128xf32>
    %c0_4 = arith.constant 0 : index
    %c0_5 = arith.constant 0 : index
    %5 = vector.load %arg4[%c0_4, %c0_5] : memref<128x128xf32, #tpu.memory_space<vmem>>, vector<128x128xf32>
    %cst = arith.constant dense<0.000000e+00> : vector<16x128xf32>
    %6 = tpu.matmul %4, %5, %cst {dimension_numbers = #tpu.dot_dimension_numbers<[1], [0], [0], [1], [0, 0, 1, 1], [], []>} : vector<16x128xf32>, vector<128x128xf32>, vector<16x128xf32> -> vector<16x128xf32>
    %7 = arith.addf %3, %6 : vector<16x128xf32>
    %c0_6 = arith.constant 0 : index
    %c0_7 = arith.constant 0 : index
    %8 = vector.load %arg7[%c0_6, %c0_7] : memref<16x128xf32, #tpu.memory_space<vmem>>, vector<16x128xf32>
    tpu.vector_store %arg7[%c0_6, %c0_7], %7 {strides = array<i32>} : memref<16x128xf32, #tpu.memory_space<vmem>>, vector<16x128xf32>,
    %c0_i32_8 = arith.constant 0 : i32
    %9 = arith.cmpi eq, %arg2, %c0_i32_8 : i32
    %10 = arith.extui %9 : i1 to i32
    %c0_i32_9 = arith.constant 0 : i32
    %11 = arith.cmpi ne, %10, %c0_i32_9 : i32
    scf.if %11 {
      %c0_10 = arith.constant 0 : index
      %c0_11 = arith.constant 0 : index
      %12 = vector.load %arg7[%c0_10, %c0_11] : memref<16x128xf32, #tpu.memory_space<vmem>>, vector<16x128xf32>
      %c0_12 = arith.constant 0 : index
      %c0_13 = arith.constant 0 : index
      %13 = vector.load %arg5[%c0_12, %c0_13] : memref<1x128xf32, #tpu.memory_space<vmem>>, vector<1x128xf32>
      %14 = vector.broadcast %13 : vector<1x128xf32> to vector<16x128xf32>
      %15 = arith.addf %12, %14 : vector<16x128xf32>
      %c0_14 = arith.constant 0 : index
      %c0_15 = arith.constant 0 : index
      %16 = vector.load %arg6[%c0_14, %c0_15] : memref<16x128xf32, #tpu.memory_space<vmem>>, vector<16x128xf32>
      tpu.vector_store %arg6[%c0_14, %c0_15], %15 {strides = array<i32>} : memref<16x128xf32, #tpu.memory_space<vmem>>, vector<16x128xf32>,
    } else {
    }
    return
  }
  func.func @transform_0(%arg0: i32, %arg1: i32, %arg2: i32) -> (i32, i32) {
    %c0_i32 = arith.constant 0 : i32
    return %arg0, %arg2 : i32, i32
  }
  func.func @transform_1(%arg0: i32, %arg1: i32, %arg2: i32) -> (i32, i32) {
    %c0_i32 = arith.constant 0 : i32
    return %arg2, %arg1 : i32, i32
  }
  func.func @transform_2(%arg0: i32, %arg1: i32, %arg2: i32) -> (i32, i32) {
    %c0_i32 = arith.constant 0 : i32
    %c0_i32_0 = arith.constant 0 : i32
    return %c0_i32, %arg1 : i32, i32
  }
  func.func @transform_3(%arg0: i32, %arg1: i32, %arg2: i32) -> (i32, i32) {
    %c0_i32 = arith.constant 0 : i32
    return %arg0, %arg1 : i32, i32
  }
}

module attributes {stable_mosaic.version = 11 : i64} {
  func.func @_attn_kernel(%arg0: i32, %arg1: memref<1x4x8x8xf32, #tpu.memory_space<vmem>>, %arg2: memref<1x4x8x8xf32, #tpu.memory_space<vmem>>, %arg3: memref<1x4x8x8xf32, #tpu.memory_space<vmem>>, %arg4: memref<8x8xf32, #tpu.memory_space<vmem>>, %arg5: memref<1x4x8x8xf32, #tpu.memory_space<vmem>>) attributes {dimension_semantics = [#tpu.dimension_semantics<parallel>], iteration_bounds = array<i64: 2>, scalar_prefetch = 0 : i64, scratch_operands = 0 : i64, tpu.core_type = #tpu.core_type<tc>, window_params = [{transform_indices = @transform_0, window_bounds = array<i64: 1, 4, 8, 8>}, {transform_indices = @transform_1, window_bounds = array<i64: 1, 4, 8, 8>}, {transform_indices = @transform_2, window_bounds = array<i64: 1, 4, 8, 8>}, {pipeline_mode = #tpu.pipeline_mode<synchronous>, transform_indices = @transform_3, window_bounds = array<i64: 8, 8>}, {transform_indices = @transform_4, window_bounds = array<i64: 1, 4, 8, 8>}]} {
    %c0 = arith.constant 0 : index
    %c0_0 = arith.constant 0 : index
    %c0_1 = arith.constant 0 : index
    %c0_2 = arith.constant 0 : index
    %0 = vector.load %arg1[%c0, %c0_0, %c0_1, %c0_2] : memref<1x4x8x8xf32, #tpu.memory_space<vmem>>, vector<1x4x8x8xf32>
    %1 = vector.shape_cast %0 : vector<1x4x8x8xf32> to vector<4x8x8xf32>
    %c0_3 = arith.constant 0 : index
    %c0_4 = arith.constant 0 : index
    %c0_5 = arith.constant 0 : index
    %c0_6 = arith.constant 0 : index
    %2 = vector.load %arg2[%c0_3, %c0_4, %c0_5, %c0_6] : memref<1x4x8x8xf32, #tpu.memory_space<vmem>>, vector<1x4x8x8xf32>
    %3 = vector.shape_cast %2 : vector<1x4x8x8xf32> to vector<4x8x8xf32>
    %c0_7 = arith.constant 0 : index
    %c0_8 = arith.constant 0 : index
    %c0_9 = arith.constant 0 : index
    %c0_10 = arith.constant 0 : index
    %4 = vector.load %arg3[%c0_7, %c0_8, %c0_9, %c0_10] : memref<1x4x8x8xf32, #tpu.memory_space<vmem>>, vector<1x4x8x8xf32>
    %5 = vector.shape_cast %4 : vector<1x4x8x8xf32> to vector<4x8x8xf32>
    "tpu.trace_start"() <{level = 10 : i32, message = "hqd,hkd->hqk"}> : () -> ()
    %cst = arith.constant dense<0.000000e+00> : vector<4x8x8xf32>
    %6 = tpu.matmul %1, %3, %cst {dimension_numbers = #tpu.dot_dimension_numbers<[2], [2], [1], [1], [0, 0, 0, 1, 1, 1], [0], [0]>} : vector<4x8x8xf32>, vector<4x8x8xf32>, vector<4x8x8xf32> -> vector<4x8x8xf32>
    "tpu.trace_stop"() : () -> ()
    %cst_11 = arith.constant 0.353553385 : f32
    %7 = vector.broadcast %cst_11 : f32 to vector<4x8x8xf32>
    %8 = arith.mulf %6, %7 : vector<4x8x8xf32>
    %c0_12 = arith.constant 0 : index
    %c0_13 = arith.constant 0 : index
    %9 = vector.load %arg4[%c0_12, %c0_13] : memref<8x8xf32, #tpu.memory_space<vmem>>, vector<8x8xf32>
    %10 = vector.shape_cast %9 : vector<8x8xf32> to vector<1x8x8xf32>
    %11 = vector.broadcast %10 : vector<1x8x8xf32> to vector<4x8x8xf32>
    %12 = arith.addf %8, %11 : vector<4x8x8xf32>
    %cst_14 = arith.constant dense<0xFF800000> : vector<4x8xf32>
    %13 = vector.multi_reduction <maximumf>, %12, %cst_14 [2] : vector<4x8x8xf32> to vector<4x8xf32>
    %14 = vector.shape_cast %13 : vector<4x8xf32> to vector<4x8x1xf32>
    %15 = vector.broadcast %14 : vector<4x8x1xf32> to vector<4x8x8xf32>
    %16 = arith.subf %12, %15 : vector<4x8x8xf32>
    %17 = math.exp %16 : vector<4x8x8xf32>
    %cst_15 = arith.constant dense<0.000000e+00> : vector<4x8xf32>
    %18 = vector.multi_reduction <add>, %17, %cst_15 [2] : vector<4x8x8xf32> to vector<4x8xf32>
    %19 = vector.shape_cast %18 : vector<4x8xf32> to vector<4x8x1xf32>
    %20 = tpu.reciprocal %19 {approx = true} : vector<4x8x1xf32> -> vector<4x8x1xf32>
    %21 = vector.broadcast %20 : vector<4x8x1xf32> to vector<4x8x8xf32>
    %22 = arith.mulf %17, %21 : vector<4x8x8xf32>
    "tpu.trace_start"() <{level = 10 : i32, message = "hqk,hkd->hqd"}> : () -> ()
    %cst_16 = arith.constant dense<0.000000e+00> : vector<4x8x8xf32>
    %23 = tpu.matmul %22, %5, %cst_16 {dimension_numbers = #tpu.dot_dimension_numbers<[2], [1], [1], [2], [0, 0, 0, 1, 1, 2], [0], [0]>} : vector<4x8x8xf32>, vector<4x8x8xf32>, vector<4x8x8xf32> -> vector<4x8x8xf32>
    "tpu.trace_stop"() : () -> ()
    %c0_17 = arith.constant 0 : index
    %c0_18 = arith.constant 0 : index
    %c0_19 = arith.constant 0 : index
    %c0_20 = arith.constant 0 : index
    %24 = vector.load %arg5[%c0_17, %c0_18, %c0_19, %c0_20] : memref<1x4x8x8xf32, #tpu.memory_space<vmem>>, vector<1x4x8x8xf32>
    %25 = vector.shape_cast %24 : vector<1x4x8x8xf32> to vector<4x8x8xf32>
    %26 = vector.shape_cast %23 : vector<4x8x8xf32> to vector<1x4x8x8xf32>
    tpu.vector_store %arg5[%c0_17, %c0_18, %c0_19, %c0_20], %26 {strides = array<i32>} : memref<1x4x8x8xf32, #tpu.memory_space<vmem>>, vector<1x4x8x8xf32>,
    return
  }
  func.func @transform_0(%arg0: i32) -> (i32, i32, i32, i32) {
    %c0_i32 = arith.constant 0 : i32
    %c0_i32_0 = arith.constant 0 : i32
    %c0_i32_1 = arith.constant 0 : i32
    %c0_i32_2 = arith.constant 0 : i32
    return %arg0, %c0_i32, %c0_i32_0, %c0_i32_1 : i32, i32, i32, i32
  }
  func.func @transform_1(%arg0: i32) -> (i32, i32, i32, i32) {
    %c0_i32 = arith.constant 0 : i32
    %c0_i32_0 = arith.constant 0 : i32
    %c0_i32_1 = arith.constant 0 : i32
    %c0_i32_2 = arith.constant 0 : i32
    return %arg0, %c0_i32, %c0_i32_0, %c0_i32_1 : i32, i32, i32, i32
  }
  func.func @transform_2(%arg0: i32) -> (i32, i32, i32, i32) {
    %c0_i32 = arith.constant 0 : i32
    %c0_i32_0 = arith.constant 0 : i32
    %c0_i32_1 = arith.constant 0 : i32
    %c0_i32_2 = arith.constant 0 : i32
    return %arg0, %c0_i32, %c0_i32_0, %c0_i32_1 : i32, i32, i32, i32
  }
  func.func @transform_3(%arg0: i32) -> (i32, i32) {
    %c0_i32 = arith.constant 0 : i32
    %c0_i32_0 = arith.constant 0 : i32
    %c0_i32_1 = arith.constant 0 : i32
    return %c0_i32, %c0_i32_0 : i32, i32
  }
  func.func @transform_4(%arg0: i32) -> (i32, i32, i32, i32) {
    %c0_i32 = arith.constant 0 : i32
    %c0_i32_0 = arith.constant 0 : i32
    %c0_i32_1 = arith.constant 0 : i32
    %c0_i32_2 = arith.constant 0 : i32
    return %arg0, %c0_i32, %c0_i32_0, %c0_i32_1 : i32, i32, i32, i32
  }
}

module attributes {stable_mosaic.version = 11 : i64} {
  func.func @_linear_add_ln_kernel(%arg0: i32, %arg1: memref<16x32xf32, #tpu.memory_space<vmem>>, %arg2: memref<32x32xf32, #tpu.memory_space<vmem>>, %arg3: memref<1x32xf32, #tpu.memory_space<vmem>>, %arg4: memref<16x32xf32, #tpu.memory_space<vmem>>, %arg5: memref<1x32xf32, #tpu.memory_space<vmem>>, %arg6: memref<1x32xf32, #tpu.memory_space<vmem>>, %arg7: memref<16x32xf32, #tpu.memory_space<vmem>>) attributes {dimension_semantics = [#tpu.dimension_semantics<parallel>], iteration_bounds = array<i64: 1>, scalar_prefetch = 0 : i64, scratch_operands = 0 : i64, tpu.core_type = #tpu.core_type<tc>, window_params = [{transform_indices = @transform_0, window_bounds = array<i64: 16, 32>}, {pipeline_mode = #tpu.pipeline_mode<synchronous>, transform_indices = @transform_1, window_bounds = array<i64: 32, 32>}, {pipeline_mode = #tpu.pipeline_mode<synchronous>, transform_indices = @transform_2, window_bounds = array<i64: 1, 32>}, {transform_indices = @transform_3, window_bounds = array<i64: 16, 32>}, {pipeline_mode = #tpu.pipeline_mode<synchronous>, transform_indices = @transform_4, window_bounds = array<i64: 1, 32>}, {pipeline_mode = #tpu.pipeline_mode<synchronous>, transform_indices = @transform_5, window_bounds = array<i64: 1, 32>}, {transform_indices = @transform_6, window_bounds = array<i64: 16, 32>}]} {
    %c0 = arith.constant 0 : index
    %c0_0 = arith.constant 0 : index
    %0 = vector.load %arg1[%c0, %c0_0] : memref<16x32xf32, #tpu.memory_space<vmem>>, vector<16x32xf32>
    %c0_1 = arith.constant 0 : index
    %c0_2 = arith.constant 0 : index
    %1 = vector.load %arg2[%c0_1, %c0_2] : memref<32x32xf32, #tpu.memory_space<vmem>>, vector<32x32xf32>
    %cst = arith.constant dense<0.000000e+00> : vector<16x32xf32>
    %2 = tpu.matmul %0, %1, %cst {dimension_numbers = #tpu.dot_dimension_numbers<[1], [0], [0], [1], [0, 0, 1, 1], [], []>} : vector<16x32xf32>, vector<32x32xf32>, vector<16x32xf32> -> vector<16x32xf32>
    %c0_3 = arith.constant 0 : index
    %c0_4 = arith.constant 0 : index
    %3 = vector.load %arg3[%c0_3, %c0_4] : memref<1x32xf32, #tpu.memory_space<vmem>>, vector<1x32xf32>
    %4 = vector.broadcast %3 : vector<1x32xf32> to vector<16x32xf32>
    %5 = arith.addf %2, %4 : vector<16x32xf32>
    %c0_5 = arith.constant 0 : index
    %c0_6 = arith.constant 0 : index
    %6 = vector.load %arg4[%c0_5, %c0_6] : memref<16x32xf32, #tpu.memory_space<vmem>>, vector<16x32xf32>
    %7 = arith.addf %5, %6 : vector<16x32xf32>
    %cst_7 = arith.constant dense<0.000000e+00> : vector<16xf32>
    %8 = vector.multi_reduction <add>, %7, %cst_7 [1] : vector<16x32xf32> to vector<16xf32>
    %9 = vector.shape_cast %8 : vector<16xf32> to vector<16x1xf32>
    %cst_8 = arith.constant 3.200000e+01 : f32
    %10 = vector.broadcast %cst_8 : f32 to vector<16x1xf32>
    %11 = arith.divf %9, %10 : vector<16x1xf32>
    %12 = vector.broadcast %11 : vector<16x1xf32> to vector<16x32xf32>
    %13 = arith.subf %7, %12 : vector<16x32xf32>
    %14 = arith.mulf %13, %13 : vector<16x32xf32>
    %cst_9 = arith.constant dense<0.000000e+00> : vector<16xf32>
    %15 = vector.multi_reduction <add>, %14, %cst_9 [1] : vector<16x32xf32> to vector<16xf32>
    %16 = vector.shape_cast %15 : vector<16xf32> to vector<16x1xf32>
    %cst_10 = arith.constant 3.200000e+01 : f32
    %17 = vector.broadcast %cst_10 : f32 to vector<16x1xf32>
    %18 = arith.divf %16, %17 : vector<16x1xf32>
    %19 = vector.broadcast %11 : vector<16x1xf32> to vector<16x32xf32>
    %20 = arith.subf %7, %19 : vector<16x32xf32>
    %cst_11 = arith.constant 9.99999974E-6 : f32
    %21 = vector.broadcast %cst_11 : f32 to vector<16x1xf32>
    %22 = arith.addf %18, %21 : vector<16x1xf32>
    %23 = math.rsqrt %22 : vector<16x1xf32>
    %24 = vector.broadcast %23 : vector<16x1xf32> to vector<16x32xf32>
    %25 = arith.mulf %20, %24 : vector<16x32xf32>
    %c0_12 = arith.constant 0 : index
    %c0_13 = arith.constant 0 : index
    %26 = vector.load %arg5[%c0_12, %c0_13] : memref<1x32xf32, #tpu.memory_space<vmem>>, vector<1x32xf32>
    %27 = vector.broadcast %26 : vector<1x32xf32> to vector<16x32xf32>
    %28 = arith.mulf %25, %27 : vector<16x32xf32>
    %c0_14 = arith.constant 0 : index
    %c0_15 = arith.constant 0 : index
    %29 = vector.load %arg6[%c0_14, %c0_15] : memref<1x32xf32, #tpu.memory_space<vmem>>, vector<1x32xf32>
    %30 = vector.broadcast %29 : vector<1x32xf32> to vector<16x32xf32>
    %31 = arith.addf %28, %30 : vector<16x32xf32>
    %c0_16 = arith.constant 0 : index
    %c0_17 = arith.constant 0 : index
    %32 = vector.load %arg7[%c0_16, %c0_17] : memref<16x32xf32, #tpu.memory_space<vmem>>, vector<16x32xf32>
    tpu.vector_store %arg7[%c0_16, %c0_17], %31 {strides = array<i32>} : memref<16x32xf32, #tpu.memory_space<vmem>>, vector<16x32xf32>,
    return
  }
  func.func @transform_0(%arg0: i32) -> (i32, i32) {
    %c0_i32 = arith.constant 0 : i32
    %c0_i32_0 = arith.constant 0 : i32
    return %arg0, %c0_i32 : i32, i32
  }
  func.func @transform_1(%arg0: i32) -> (i32, i32) {
    %c0_i32 = arith.constant 0 : i32
    %c0_i32_0 = arith.constant 0 : i32
    %c0_i32_1 = arith.constant 0 : i32
    return %c0_i32, %c0_i32_0 : i32, i32
  }
  func.func @transform_2(%arg0: i32) -> (i32, i32) {
    %c0_i32 = arith.constant 0 : i32
    %c0_i32_0 = arith.constant 0 : i32
    %c0_i32_1 = arith.constant 0 : i32
    return %c0_i32, %c0_i32_0 : i32, i32
  }
  func.func @transform_3(%arg0: i32) -> (i32, i32) {
    %c0_i32 = arith.constant 0 : i32
    %c0_i32_0 = arith.constant 0 : i32
    return %arg0, %c0_i32 : i32, i32
  }
  func.func @transform_4(%arg0: i32) -> (i32, i32) {
    %c0_i32 = arith.constant 0 : i32
    %c0_i32_0 = arith.constant 0 : i32
    %c0_i32_1 = arith.constant 0 : i32
    return %c0_i32, %c0_i32_0 : i32, i32
  }
  func.func @transform_5(%arg0: i32) -> (i32, i32) {
    %c0_i32 = arith.constant 0 : i32
    %c0_i32_0 = arith.constant 0 : i32
    %c0_i32_1 = arith.constant 0 : i32
    return %c0_i32, %c0_i32_0 : i32, i32
  }
  func.func @transform_6(%arg0: i32) -> (i32, i32) {
    %c0_i32 = arith.constant 0 : i32
    %c0_i32_0 = arith.constant 0 : i32
    return %arg0, %c0_i32 : i32, i32
  }
}

module attributes {stable_mosaic.version = 11 : i64} {
  func.func @_ffn_ln_kernel(%arg0: i32, %arg1: i32, %arg2: memref<16x32xf32, #tpu.memory_space<vmem>>, %arg3: memref<32x128xf32, #tpu.memory_space<vmem>>, %arg4: memref<1x128xf32, #tpu.memory_space<vmem>>, %arg5: memref<128x32xf32, #tpu.memory_space<vmem>>, %arg6: memref<1x32xf32, #tpu.memory_space<vmem>>, %arg7: memref<16x32xf32, #tpu.memory_space<vmem>>, %arg8: memref<1x32xf32, #tpu.memory_space<vmem>>, %arg9: memref<1x32xf32, #tpu.memory_space<vmem>>, %arg10: memref<16x32xf32, #tpu.memory_space<vmem>>, %arg11: memref<16x32xf32, #tpu.memory_space<vmem>>) attributes {dimension_semantics = [#tpu.dimension_semantics<parallel>, #tpu.dimension_semantics<arbitrary>], iteration_bounds = array<i64: 1, 1>, scalar_prefetch = 0 : i64, scratch_operands = 1 : i64, tpu.core_type = #tpu.core_type<tc>, window_params = [{transform_indices = @transform_0, window_bounds = array<i64: 16, 32>}, {transform_indices = @transform_1, window_bounds = array<i64: 32, 128>}, {transform_indices = @transform_2, window_bounds = array<i64: 1, 128>}, {transform_indices = @transform_3, window_bounds = array<i64: 128, 32>}, {pipeline_mode = #tpu.pipeline_mode<synchronous>, transform_indices = @transform_4, window_bounds = array<i64: 1, 32>}, {transform_indices = @transform_5, window_bounds = array<i64: 16, 32>}, {pipeline_mode = #tpu.pipeline_mode<synchronous>, transform_indices = @transform_6, window_bounds = array<i64: 1, 32>}, {pipeline_mode = #tpu.pipeline_mode<synchronous>, transform_indices = @transform_7, window_bounds = array<i64: 1, 32>}, {transform_indices = @transform_8, window_bounds = array<i64: 16, 32>}]} {
    %c0_i32 = arith.constant 0 : i32
    %0 = arith.cmpi eq, %arg1, %c0_i32 : i32
    %1 = arith.extui %0 : i1 to i32
    %c0_i32_0 = arith.constant 0 : i32
    %2 = arith.cmpi ne, %1, %c0_i32_0 : i32
    scf.if %2 {
      %cst_16 = arith.constant 0.000000e+00 : f32
      %19 = vector.broadcast %cst_16 : f32 to vector<16x32xf32>
      %c0_17 = arith.constant 0 : index
      %c0_18 = arith.constant 0 : index
      %20 = vector.load %arg11[%c0_17, %c0_18] : memref<16x32xf32, #tpu.memory_space<vmem>>, vector<16x32xf32>
      tpu.vector_store %arg11[%c0_17, %c0_18], %19 {strides = array<i32>} : memref<16x32xf32, #tpu.memory_space<vmem>>, vector<16x32xf32>,
    } else {
    }
    %c0 = arith.constant 0 : index
    %c0_1 = arith.constant 0 : index
    %3 = vector.load %arg2[%c0, %c0_1] : memref<16x32xf32, #tpu.memory_space<vmem>>, vector<16x32xf32>
    %c0_2 = arith.constant 0 : index
    %c0_3 = arith.constant 0 : index
    %4 = vector.load %arg3[%c0_2, %c0_3] : memref<32x128xf32, #tpu.memory_space<vmem>>, vector<32x128xf32>
    %cst = arith.constant dense<0.000000e+00> : vector<16x128xf32>
    %5 = tpu.matmul %3, %4, %cst {dimension_numbers = #tpu.dot_dimension_numbers<[1], [0], [0], [1], [0, 0, 1, 1], [], []>} : vector<16x32xf32>, vector<32x128xf32>, vector<16x128xf32> -> vector<16x128xf32>
    %c0_4 = arith.constant 0 : index
    %c0_5 = arith.constant 0 : index
    %6 = vector.load %arg4[%c0_4, %c0_5] : memref<1x128xf32, #tpu.memory_space<vmem>>, vector<1x128xf32>
    %7 = vector.broadcast %6 : vector<1x128xf32> to vector<16x128xf32>
    %8 = arith.addf %5, %7 : vector<16x128xf32>
    %cst_6 = arith.constant 0.000000e+00 : f32
    %9 = vector.broadcast %cst_6 : f32 to vector<16x128xf32>
    %10 = arith.maximumf %8, %9 : vector<16x128xf32>
    %c0_7 = arith.constant 0 : index
    %c0_8 = arith.constant 0 : index
    %11 = vector.load %arg11[%c0_7, %c0_8] : memref<16x32xf32, #tpu.memory_space<vmem>>, vector<16x32xf32>
    %c0_9 = arith.constant 0 : index
    %c0_10 = arith.constant 0 : index
    %12 = vector.load %arg5[%c0_9, %c0_10] : memref<128x32xf32, #tpu.memory_space<vmem>>, vector<128x32xf32>
    %cst_11 = arith.constant dense<0.000000e+00> : vector<16x32xf32>
    %13 = tpu.matmul %10, %12, %cst_11 {dimension_numbers = #tpu.dot_dimension_numbers<[1], [0], [0], [1], [0, 0, 1, 1], [], []>} : vector<16x128xf32>, vector<128x32xf32>, vector<16x32xf32> -> vector<16x32xf32>
    %14 = arith.addf %11, %13 : vector<16x32xf32>
    %c0_12 = arith.constant 0 : index
    %c0_13 = arith.constant 0 : index
    %15 = vector.load %arg11[%c0_12, %c0_13] : memref<16x32xf32, #tpu.memory_space<vmem>>, vector<16x32xf32>
    tpu.vector_store %arg11[%c0_12, %c0_13], %14 {strides = array<i32>} : memref<16x32xf32, #tpu.memory_space<vmem>>, vector<16x32xf32>,
    %c0_i32_14 = arith.constant 0 : i32
    %16 = arith.cmpi eq, %arg1, %c0_i32_14 : i32
    %17 = arith.extui %16 : i1 to i32
    %c0_i32_15 = arith.constant 0 : i32
    %18 = arith.cmpi ne, %17, %c0_i32_15 : i32
    scf.if %18 {
      %c0_16 = arith.constant 0 : index
      %c0_17 = arith.constant 0 : index
      %19 = vector.load %arg11[%c0_16, %c0_17] : memref<16x32xf32, #tpu.memory_space<vmem>>, vector<16x32xf32>
      %c0_18 = arith.constant 0 : index
      %c0_19 = arith.constant 0 : index
      %20 = vector.load %arg6[%c0_18, %c0_19] : memref<1x32xf32, #tpu.memory_space<vmem>>, vector<1x32xf32>
      %21 = vector.broadcast %20 : vector<1x32xf32> to vector<16x32xf32>
      %22 = arith.addf %19, %21 : vector<16x32xf32>
      %c0_20 = arith.constant 0 : index
      %c0_21 = arith.constant 0 : index
      %23 = vector.load %arg7[%c0_20, %c0_21] : memref<16x32xf32, #tpu.memory_space<vmem>>, vector<16x32xf32>
      %24 = arith.addf %22, %23 : vector<16x32xf32>
      %cst_22 = arith.constant dense<0.000000e+00> : vector<16xf32>
      %25 = vector.multi_reduction <add>, %24, %cst_22 [1] : vector<16x32xf32> to vector<16xf32>
      %26 = vector.shape_cast %25 : vector<16xf32> to vector<16x1xf32>
      %cst_23 = arith.constant 3.200000e+01 : f32
      %27 = vector.broadcast %cst_23 : f32 to vector<16x1xf32>
      %28 = arith.divf %26, %27 : vector<16x1xf32>
      %29 = vector.broadcast %28 : vector<16x1xf32> to vector<16x32xf32>
      %30 = arith.subf %24, %29 : vector<16x32xf32>
      %31 = arith.mulf %30, %30 : vector<16x32xf32>
      %cst_24 = arith.constant dense<0.000000e+00> : vector<16xf32>
      %32 = vector.multi_reduction <add>, %31, %cst_24 [1] : vector<16x32xf32> to vector<16xf32>
      %33 = vector.shape_cast %32 : vector<16xf32> to vector<16x1xf32>
      %cst_25 = arith.constant 3.200000e+01 : f32
      %34 = vector.broadcast %cst_25 : f32 to vector<16x1xf32>
      %35 = arith.divf %33, %34 : vector<16x1xf32>
      %36 = vector.broadcast %28 : vector<16x1xf32> to vector<16x32xf32>
      %37 = arith.subf %24, %36 : vector<16x32xf32>
      %cst_26 = arith.constant 9.99999974E-6 : f32
      %38 = vector.broadcast %cst_26 : f32 to vector<16x1xf32>
      %39 = arith.addf %35, %38 : vector<16x1xf32>
      %40 = math.rsqrt %39 : vector<16x1xf32>
      %41 = vector.broadcast %40 : vector<16x1xf32> to vector<16x32xf32>
      %42 = arith.mulf %37, %41 : vector<16x32xf32>
      %c0_27 = arith.constant 0 : index
      %c0_28 = arith.constant 0 : index
      %43 = vector.load %arg8[%c0_27, %c0_28] : memref<1x32xf32, #tpu.memory_space<vmem>>, vector<1x32xf32>
      %44 = vector.broadcast %43 : vector<1x32xf32> to vector<16x32xf32>
      %45 = arith.mulf %42, %44 : vector<16x32xf32>
      %c0_29 = arith.constant 0 : index
      %c0_30 = arith.constant 0 : index
      %46 = vector.load %arg9[%c0_29, %c0_30] : memref<1x32xf32, #tpu.memory_space<vmem>>, vector<1x32xf32>
      %47 = vector.broadcast %46 : vector<1x32xf32> to vector<16x32xf32>
      %48 = arith.addf %45, %47 : vector<16x32xf32>
      %c0_31 = arith.constant 0 : index
      %c0_32 = arith.constant 0 : index
      %49 = vector.load %arg10[%c0_31, %c0_32] : memref<16x32xf32, #tpu.memory_space<vmem>>, vector<16x32xf32>
      tpu.vector_store %arg10[%c0_31, %c0_32], %48 {strides = array<i32>} : memref<16x32xf32, #tpu.memory_space<vmem>>, vector<16x32xf32>,
    } else {
    }
    return
  }
  func.func @transform_0(%arg0: i32, %arg1: i32) -> (i32, i32) {
    %c0_i32 = arith.constant 0 : i32
    %c0_i32_0 = arith.constant 0 : i32
    return %arg0, %c0_i32 : i32, i32
  }
  func.func @transform_1(%arg0: i32, %arg1: i32) -> (i32, i32) {
    %c0_i32 = arith.constant 0 : i32
    %c0_i32_0 = arith.constant 0 : i32
    return %c0_i32, %arg1 : i32, i32
  }
  func.func @transform_2(%arg0: i32, %arg1: i32) -> (i32, i32) {
    %c0_i32 = arith.constant 0 : i32
    %c0_i32_0 = arith.constant 0 : i32
    return %c0_i32, %arg1 : i32, i32
  }
  func.func @transform_3(%arg0: i32, %arg1: i32) -> (i32, i32) {
    %c0_i32 = arith.constant 0 : i32
    %c0_i32_0 = arith.constant 0 : i32
    return %arg1, %c0_i32 : i32, i32
  }
  func.func @transform_4(%arg0: i32, %arg1: i32) -> (i32, i32) {
    %c0_i32 = arith.constant 0 : i32
    %c0_i32_0 = arith.constant 0 : i32
    %c0_i32_1 = arith.constant 0 : i32
    return %c0_i32, %c0_i32_0 : i32, i32
  }
  func.func @transform_5(%arg0: i32, %arg1: i32) -> (i32, i32) {
    %c0_i32 = arith.constant 0 : i32
    %c0_i32_0 = arith.constant 0 : i32
    return %arg0, %c0_i32 : i32, i32
  }
  func.func @transform_6(%arg0: i32, %arg1: i32) -> (i32, i32) {
    %c0_i32 = arith.constant 0 : i32
    %c0_i32_0 = arith.constant 0 : i32
    %c0_i32_1 = arith.constant 0 : i32
    return %c0_i32, %c0_i32_0 : i32, i32
  }
  func.func @transform_7(%arg0: i32, %arg1: i32) -> (i32, i32) {
    %c0_i32 = arith.constant 0 : i32
    %c0_i32_0 = arith.constant 0 : i32
    %c0_i32_1 = arith.constant 0 : i32
    return %c0_i32, %c0_i32_0 : i32, i32
  }
  func.func @transform_8(%arg0: i32, %arg1: i32) -> (i32, i32) {
    %c0_i32 = arith.constant 0 : i32
    %c0_i32_0 = arith.constant 0 : i32
    return %arg0, %c0_i32 : i32, i32
  }
}

module attributes {stable_mosaic.version = 11 : i64} {
  func.func @_linear_kernel(%arg0: i32, %arg1: i32, %arg2: i32, %arg3: memref<16x128xf32, #tpu.memory_space<vmem>>, %arg4: memref<128x128xf32, #tpu.memory_space<vmem>>, %arg5: memref<1x128xf32, #tpu.memory_space<vmem>>, %arg6: memref<16x128xf32, #tpu.memory_space<vmem>>, %arg7: memref<16x128xf32, #tpu.memory_space<vmem>>) attributes {dimension_semantics = [#tpu.dimension_semantics<parallel>, #tpu.dimension_semantics<parallel>, #tpu.dimension_semantics<arbitrary>], iteration_bounds = array<i64: 1, 1, 1>, scalar_prefetch = 0 : i64, scratch_operands = 1 : i64, tpu.core_type = #tpu.core_type<tc>, window_params = [{transform_indices = @transform_0, window_bounds = array<i64: 16, 128>}, {transform_indices = @transform_1, window_bounds = array<i64: 128, 128>}, {transform_indices = @transform_2, window_bounds = array<i64: 1, 128>}, {transform_indices = @transform_3, window_bounds = array<i64: 16, 128>}]} {
    %c0_i32 = arith.constant 0 : i32
    %0 = arith.cmpi eq, %arg2, %c0_i32 : i32
    %1 = arith.extui %0 : i1 to i32
    %c0_i32_0 = arith.constant 0 : i32
    %2 = arith.cmpi ne, %1, %c0_i32_0 : i32
    scf.if %2 {
      %cst_10 = arith.constant 0.000000e+00 : f32
      %12 = vector.broadcast %cst_10 : f32 to vector<16x128xf32>
      %c0_11 = arith.constant 0 : index
      %c0_12 = arith.constant 0 : index
      %13 = vector.load %arg7[%c0_11, %c0_12] : memref<16x128xf32, #tpu.memory_space<vmem>>, vector<16x128xf32>
      tpu.vector_store %arg7[%c0_11, %c0_12], %12 {strides = array<i32>} : memref<16x128xf32, #tpu.memory_space<vmem>>, vector<16x128xf32>,
    } else {
    }
    %c0 = arith.constant 0 : index
    %c0_1 = arith.constant 0 : index
    %3 = vector.load %arg7[%c0, %c0_1] : memref<16x128xf32, #tpu.memory_space<vmem>>, vector<16x128xf32>
    %c0_2 = arith.constant 0 : index
    %c0_3 = arith.constant 0 : index
    %4 = vector.load %arg3[%c0_2, %c0_3] : memref<16x128xf32, #tpu.memory_space<vmem>>, vector<16x128xf32>
    %c0_4 = arith.constant 0 : index
    %c0_5 = arith.constant 0 : index
    %5 = vector.load %arg4[%c0_4, %c0_5] : memref<128x128xf32, #tpu.memory_space<vmem>>, vector<128x128xf32>
    %cst = arith.constant dense<0.000000e+00> : vector<16x128xf32>
    %6 = tpu.matmul %4, %5, %cst {dimension_numbers = #tpu.dot_dimension_numbers<[1], [0], [0], [1], [0, 0, 1, 1], [], []>} : vector<16x128xf32>, vector<128x128xf32>, vector<16x128xf32> -> vector<16x128xf32>
    %7 = arith.addf %3, %6 : vector<16x128xf32>
    %c0_6 = arith.constant 0 : index
    %c0_7 = arith.constant 0 : index
    %8 = vector.load %arg7[%c0_6, %c0_7] : memref<16x128xf32, #tpu.memory_space<vmem>>, vector<16x128xf32>
    tpu.vector_store %arg7[%c0_6, %c0_7], %7 {strides = array<i32>} : memref<16x128xf32, #tpu.memory_space<vmem>>, vector<16x128xf32>,
    %c0_i32_8 = arith.constant 0 : i32
    %9 = arith.cmpi eq, %arg2, %c0_i32_8 : i32
    %10 = arith.extui %9 : i1 to i32
    %c0_i32_9 = arith.constant 0 : i32
    %11 = arith.cmpi ne, %10, %c0_i32_9 : i32
    scf.if %11 {
      %c0_10 = arith.constant 0 : index
      %c0_11 = arith.constant 0 : index
      %12 = vector.load %arg7[%c0_10, %c0_11] : memref<16x128xf32, #tpu.memory_space<vmem>>, vector<16x128xf32>
      %c0_12 = arith.constant 0 : index
      %c0_13 = arith.constant 0 : index
      %13 = vector.load %arg5[%c0_12, %c0_13] : memref<1x128xf32, #tpu.memory_space<vmem>>, vector<1x128xf32>
      %14 = vector.broadcast %13 : vector<1x128xf32> to vector<16x128xf32>
      %15 = arith.addf %12, %14 : vector<16x128xf32>
      %c0_14 = arith.constant 0 : index
      %c0_15 = arith.constant 0 : index
      %16 = vector.load %arg6[%c0_14, %c0_15] : memref<16x128xf32, #tpu.memory_space<vmem>>, vector<16x128xf32>
      tpu.vector_store %arg6[%c0_14, %c0_15], %15 {strides = array<i32>} : memref<16x128xf32, #tpu.memory_space<vmem>>, vector<16x128xf32>,
    } else {
    }
    return
  }
  func.func @transform_0(%arg0: i32, %arg1: i32, %arg2: i32) -> (i32, i32) {
    %c0_i32 = arith.constant 0 : i32
    return %arg0, %arg2 : i32, i32
  }
  func.func @transform_1(%arg0: i32, %arg1: i32, %arg2: i32) -> (i32, i32) {
    %c0_i32 = arith.constant 0 : i32
    return %arg2, %arg1 : i32, i32
  }
  func.func @transform_2(%arg0: i32, %arg1: i32, %arg2: i32) -> (i32, i32) {
    %c0_i32 = arith.constant 0 : i32
    %c0_i32_0 = arith.constant 0 : i32
    return %c0_i32, %arg1 : i32, i32
  }
  func.func @transform_3(%arg0: i32, %arg1: i32, %arg2: i32) -> (i32, i32) {
    %c0_i32 = arith.constant 0 : i32
    return %arg0, %arg1 : i32, i32
  }
}

</mosaic_0001>

<llo_original>
// kernel: transformer_forward.13
$region0: #{transformer_forward.13}
  #allocation0 [shape = 'u32[]', space=smem, size = 0x4, offset = 0x4, fixed_abs, tag = 'smem constant byte address 0x4 - core index']
  #allocation1 [shape = 'u32[144,128]{1,0:T(1,128)}', space=vmem, size = 0x12000, scoped, tag = 'internal scratch']
  %s0 = inlined_call_operand.vmem [shape: f32[16,32], index: 0, kind: input, shape index: {}]
  %s1 = inlined_call_operand.vmem [shape: f32[32,32], index: 1, kind: input, shape index: {}]
  %s2 = inlined_call_operand.vmem [shape: f32[1,32], index: 2, kind: input, shape index: {}]
  %s3 = inlined_call_operand.vmem [shape: f32[16,32], index: 3, kind: input, shape index: {}]
  %s4 = inlined_call_operand.vmem [shape: f32[1,32], index: 4, kind: input, shape index: {}]
  %s5 = inlined_call_operand.vmem [shape: f32[1,32], index: 5, kind: input, shape index: {}]
  %s6 = inlined_call_operand.vmem [shape: f32[16,32], index: 6, kind: output, shape index: {}]
  %s7 = sld [smem:[#allocation0]]
  $region34: #{transformer_forward.13} parent=0
    _
  %s9 = ssub.s32 1, %s7
  %s10 = scalar_select 0, %s9, %s7
  // Predicated region
  $region2: #{transformer_forward.13} parent=0 // pred_check
    _
  $region3: #{transformer_forward.13} parent=0 // pred_check_branch
    %12 = sbr.rel (0) target = $region5
  $region4: #{transformer_forward.13} parent=0 // pred_region
    _
  $region5: #{transformer_forward.13} parent=0 // pred_fallthru
    _
  // Predicated region
  $region6: #{transformer_forward.13} parent=0 // pred_check
    _
  $region7: #{transformer_forward.13} parent=0 // pred_check_branch
    %14 = sbr.rel (0) target = $region9
  $region8: #{transformer_forward.13} parent=0 // pred_region
    _
  $region9: #{transformer_forward.13} parent=0 // pred_fallthru
    _
  // Predicated region
  $region10: #{transformer_forward.13} parent=0 // pred_check
    _
  $region11: #{transformer_forward.13} parent=0 // pred_check_branch
    %16 = sbr.rel (0) target = $region13
  $region12: #{transformer_forward.13} parent=0 // pred_region
    _
  $region13: #{transformer_forward.13} parent=0 // pred_fallthru
    _
  // Predicated region
  $region14: #{transformer_forward.13} parent=0 // pred_check
    _
  $region15: #{transformer_forward.13} parent=0 // pred_check_branch
    %18 = sbr.rel (0) target = $region17
  $region16: #{transformer_forward.13} parent=0 // pred_region
    _
  $region17: #{transformer_forward.13} parent=0 // pred_fallthru
    _
  // Predicated region
  $region18: #{transformer_forward.13} parent=0 // pred_check
    _
  $region19: #{transformer_forward.13} parent=0 // pred_check_branch
    %20 = sbr.rel (0) target = $region21
  $region20: #{transformer_forward.13} parent=0 // pred_region
    _
  $region21: #{transformer_forward.13} parent=0 // pred_fallthru
    _
  // Predicated region
  $region22: #{transformer_forward.13} parent=0 // pred_check
    _
  $region23: #{transformer_forward.13} parent=0 // pred_check_branch
    %22 = sbr.rel (0) target = $region25
  $region24: #{transformer_forward.13} parent=0 // pred_region
    _
  $region25: #{transformer_forward.13} parent=0 // pred_fallthru
    _
  %v23 = vld [vmem:[%s0] sm:$0xff]
  %v24 = vld [vmem:[%s0 + $0x8] sm:$0xff]
  %v25 = vld [vmem:[%s1] sm:$0xff]
  %v26 = vld [vmem:[%s1 + $0x8] sm:$0xff]
  %v27 = vld [vmem:[%s1 + $0x10] sm:$0xff]
  %v28 = vld [vmem:[%s1 + $0x18] sm:$0xff]
  %v29 = vld [vmem:[%s2] sm:$0x1]
  %v31 = vlaneseq
  %v32 = vshrl.u32 %v31, 7
  %v33 = vsub.s32 0, %v32
  %v34 = vrot.slane %v29, %v33
  %vm36 = vcmask 261120
  %v38 = vsel %vm36, %v23, 0
  %v41 = vsel %vm36, %v24, 0
  %43 = vmatprep.subr.mxu0 0.0
  %44 = vmatpush1.msra.mxu0 %v25
  %45 = vmatprep.subr.mxu0 0.0
  %46 = vmatpush1.msra.mxu0 %v26
  %47 = vmatprep.subr.mxu0 0.0
  %48 = vmatpush1.msra.mxu0 %v27
  %49 = vmatprep.subr.mxu0 0.0
  %50 = vmatpush1.msra.mxu0 %v28
  %51 = vmatprep.subr.mxu0 0.0
  %52 = vmatpush1.msra.mxu0 0.0
  %53 = vmatprep.subr.mxu0 0.0
  %54 = vmatpush1.msra.mxu0 0.0
  %55 = vmatprep.subr.mxu0 0.0
  %56 = vmatpush1.msra.mxu0 0.0
  %57 = vmatprep.subr.mxu0 0.0
  %58 = vmatpush1.msra.mxu0 0.0
  %59 = vmatprep.subr.mxu0 0.0
  %60 = vmatpush1.msra.mxu0 0.0
  %61 = vmatprep.subr.mxu0 0.0
  %62 = vmatpush1.msra.mxu0 0.0
  %63 = vmatprep.subr.mxu0 0.0
  %64 = vmatpush1.msra.mxu0 0.0
  %65 = vmatprep.subr.mxu0 0.0
  %66 = vmatpush1.msra.mxu0 0.0
  %67 = vmatprep.subr.mxu0 0.0
  %68 = vmatpush1.msra.mxu0 0.0
  %69 = vmatprep.subr.mxu0 0.0
  %70 = vmatpush1.msra.mxu0 0.0
  %71 = vmatprep.subr.mxu0 0.0
  %72 = vmatpush1.msra.mxu0 0.0
  %73 = vmatprep.subr.mxu0 0.0
  %74 = vmatpush1.msra.mxu0 0.0
  %75 = vmatprep.subr.mxu0 0.0
  %76 = vmatpush1.msra.mxu0 0.0
  %77 = vmatprep.subr.mxu0 0.0
  %78 = vmatpush1.msra.mxu0 0.0
  %79 = vmatprep.subr.mxu0 0.0
  %80 = vmatpush1.msra.mxu0 0.0
  %81 = vmatprep.subr.mxu0 0.0
  %82 = vmatpush1.msra.mxu0 0.0
  %83 = vmatprep.subr.mxu0 0.0
  %84 = vmatpush1.msra.mxu0 0.0
  %85 = vmatprep.subr.mxu0 0.0
  %86 = vmatpush1.msra.mxu0 0.0
  %87 = vmatprep.subr.mxu0 0.0
  %88 = vmatpush1.msra.mxu0 0.0
  %89 = vmatprep.subr.mxu0 0.0
  %90 = vmatpush1.msra.mxu0 0.0
  %91 = vmatprep.subr.mxu0 0.0
  %92 = vmatpush1.msra.mxu0 0.0
  %93 = vmatprep.subr.mxu0 0.0
  %94 = vmatpush1.msra.mxu0 0.0
  %95 = vmatprep.subr.mxu0 0.0
  %96 = vmatpush1.msra.mxu0 0.0
  %97 = vmatprep.subr.mxu0 0.0
  %98 = vmatpush1.msra.mxu0 0.0
  %99 = vmatprep.subr.mxu0 0.0
  %100 = vmatpush1.msra.mxu0 0.0
  %101 = vmatprep.subr.mxu0 0.0
  %102 = vmatpush1.msra.mxu0 0.0
  %103 = vmatprep.subr.mxu0 0.0
  %104 = vmatpush1.msra.mxu0 0.0
  %105 = vmatprep.subr.mxu0 0.0
  %106 = vmatpush1.msra.mxu0 0.0
  %107 = vmatprep.mubr.f32.mxu0 0.0
  %108 = vmatmul.mubr.f32.gmra.mrb[0].mxu0 %v38
  %v109 = vpop.f32.mrb[0].mxu0
  %v110 = vadd.f32 %v34, %v109
  %v111 = vpop.f32.mrb[0].mxu0
  %112 = vmatprep.mubr.f32.mxu0 0.0
  %113 = vmatmul.mubr.f32.gmra.mrb[0].mxu0 %v41
  %v114 = vpop.f32.mrb[0].mxu0
  %v115 = vadd.f32 %v34, %v114
  %v116 = vpop.f32.mrb[0].mxu0
  %117 = vdwg.mxu0
  %v118 = vld [vmem:[%s3] sm:$0xff]
  %v119 = vld [vmem:[%s3 + $0x8] sm:$0xff]
  %v120 = vadd.f32 %v110, %v118
  %v121 = vadd.f32 %v115, %v119
  %v122 = vsel %vm36, %v120, 0.0
  %123 = vadd.xlane.f32.xlu0 %v122
  %v124 = vpop.xlane.xlu0 %123
  %v125 = vsel %vm36, %v121, 0.0
  %126 = vadd.xlane.f32.xlu0 %v125
  %v127 = vpop.xlane.xlu0 %126
  %v128 = vrcp.pop 32.0
  %v129 = vmul.f32 %v124, %v128
  %v130 = vmul.f32 %v127, %v128
  %v131 = vsub.f32 %v120, %v129
  %v132 = vsub.f32 %v121, %v130
  %v133 = vmul.f32 %v131, %v131
  %v134 = vmul.f32 %v132, %v132
  %v135 = vsel %vm36, %v133, 0.0
  %136 = vadd.xlane.f32.xlu0 %v135
  %v137 = vpop.xlane.xlu0 %136
  %v138 = vsel %vm36, %v134, 0.0
  %139 = vadd.xlane.f32.xlu0 %v138
  %v140 = vpop.xlane.xlu0 %139
  %v141 = vmul.f32 %v137, %v128
  %v142 = vmul.f32 %v140, %v128
  %v143 = vadd.f32 %v141, 1e-05
  %v144 = vadd.f32 %v142, 1e-05
  %v145 = vrsqrt.pop %v143
  %v146 = vrsqrt.pop %v144
  %v147 = vmul.f32 %v131, %v145
  %v148 = vmul.f32 %v132, %v146
  %v149 = vld [vmem:[%s4] sm:$0x1]
  %v151 = vlaneseq
  %v152 = vshrl.u32 %v151, 7
  %v153 = vsub.s32 0, %v152
  %v154 = vrot.slane %v149, %v153
  %v156 = vmul.f32 %v147, %v154
  %v157 = vmul.f32 %v148, %v154
  %v158 = vld [vmem:[%s5] sm:$0x1]
  %v160 = vlaneseq
  %v161 = vshrl.u32 %v160, 7
  %v162 = vsub.s32 0, %v161
  %v163 = vrot.slane %v158, %v162
  %v165 = vadd.f32 %v156, %v163
  %v166 = vadd.f32 %v157, %v163
  %167 = vst.msk [vmem:[%s6] sm:$0xff] %vm36, %v165
  %168 = vst.msk [vmem:[%s6 + $0x8] sm:$0xff] %vm36, %v166
  // Predicated region
  $region26: #{transformer_forward.13} parent=0 // pred_check
    _
  $region27: #{transformer_forward.13} parent=0 // pred_check_branch
    %170 = sbr.rel (0) target = $region29
  $region28: #{transformer_forward.13} parent=0 // pred_region
    _
  $region29: #{transformer_forward.13} parent=0 // pred_fallthru
    _
  // Predicated region
  $region30: #{transformer_forward.13} parent=0 // pred_check
    _
  $region31: #{transformer_forward.13} parent=0 // pred_check_branch
    %172 = sbr.rel (0) target = $region33
  $region32: #{transformer_forward.13} parent=0 // pred_region
    _
  $region33: #{transformer_forward.13} parent=0 // pred_fallthru
    _

// kernel: transformer_forward.10
$region0: #{transformer_forward.10}
  #allocation0 [shape = 'u32[]', space=smem, size = 0x4, offset = 0x4, fixed_abs, tag = 'smem constant byte address 0x4 - core index']
  #allocation1 [shape = 'u32[144,128]{1,0:T(1,128)}', space=vmem, size = 0x12000, scoped, tag = 'internal scratch']
  %s0 = inlined_call_operand.vmem [shape: f32[8,2,32], index: 0, kind: input, shape index: {}]
  %s1 = inlined_call_operand.vmem [shape: f32[8,32], index: 1, kind: input, shape index: {}]
  %s2 = inlined_call_operand.vmem [shape: f32[8,2,32], index: 2, kind: output, shape index: {}]
  %s3 = sld [smem:[#allocation0]]
  $region18: #{transformer_forward.10} parent=0
    _
  %s5 = ssub.s32 1, %s3
  %s6 = scalar_select 0, %s5, %s3
  // Predicated region
  $region2: #{transformer_forward.10} parent=0 // pred_check
    _
  $region3: #{transformer_forward.10} parent=0 // pred_check_branch
    %8 = sbr.rel (0) target = $region5
  $region4: #{transformer_forward.10} parent=0 // pred_region
    _
  $region5: #{transformer_forward.10} parent=0 // pred_fallthru
    _
  // Predicated region
  $region6: #{transformer_forward.10} parent=0 // pred_check
    _
  $region7: #{transformer_forward.10} parent=0 // pred_check_branch
    %10 = sbr.rel (0) target = $region9
  $region8: #{transformer_forward.10} parent=0 // pred_region
    _
  $region9: #{transformer_forward.10} parent=0 // pred_fallthru
    _
  %v11 = vld [vmem:[%s0] sm:$0x3]
  %v12 = vld [vmem:[%s0 + $0x2] sm:$0x3]
  %v13 = vld [vmem:[%s0 + $0x4] sm:$0x3]
  %v14 = vld [vmem:[%s0 + $0x6] sm:$0x3]
  %v15 = vld [vmem:[%s0 + $0x8] sm:$0x3]
  %v16 = vld [vmem:[%s0 + $0xa] sm:$0x3]
  %v17 = vld [vmem:[%s0 + $0xc] sm:$0x3]
  %v18 = vld [vmem:[%s0 + $0xe] sm:$0x3]
  %v19 = vmul.f32 %v11, 5.656854
  %v20 = vmul.f32 %v12, 5.656854
  %v21 = vmul.f32 %v13, 5.656854
  %v22 = vmul.f32 %v14, 5.656854
  %v23 = vmul.f32 %v15, 5.656854
  %v24 = vmul.f32 %v16, 5.656854
  %v25 = vmul.f32 %v17, 5.656854
  %v26 = vmul.f32 %v18, 5.656854
  %v27 = vld [vmem:[%s1] sm:$0xff]
  %v29 = vcombine.high %v27, %v27
  %v31 = vunpack.c.l.s4 1966171168
  %v32 = vunpack.c.0.s8 %v31
  %v33 = vlaneseq
  %v34 = vshrl.u32 %v33, 7
  %v35 = vsub.s32 %v32, %v34
  %v36 = vrot.slane %v27, %v35
  %v38 = vunpack.c.l.s4 1966171168
  %v39 = vunpack.c.0.s8 %v38
  %v40 = vlaneseq
  %v41 = vshrl.u32 %v40, 7
  %v42 = vsub.s32 %v39, %v41
  %v43 = vrot.slane %v29, %v42
  %v44 = vcombine.high %v36, %v36
  %v45 = vcombine.high %v43, %v43
  %v47 = vunpack.c.l.s4 1966171168
  %v48 = vunpack.c.0.s8 %v47
  %v49 = vlaneseq
  %v50 = vshrl.u32 %v49, 7
  %v51 = vsub.s32 %v48, %v50
  %v52 = vrot.slane %v36, %v51
  %v54 = vunpack.c.l.s4 1966171168
  %v55 = vunpack.c.0.s8 %v54
  %v56 = vlaneseq
  %v57 = vshrl.u32 %v56, 7
  %v58 = vsub.s32 %v55, %v57
  %v59 = vrot.slane %v43, %v58
  %v61 = vunpack.c.l.s4 1966171168
  %v62 = vunpack.c.0.s8 %v61
  %v63 = vlaneseq
  %v64 = vshrl.u32 %v63, 7
  %v65 = vsub.s32 %v62, %v64
  %v66 = vrot.slane %v44, %v65
  %v68 = vunpack.c.l.s4 1966171168
  %v69 = vunpack.c.0.s8 %v68
  %v70 = vlaneseq
  %v71 = vshrl.u32 %v70, 7
  %v72 = vsub.s32 %v69, %v71
  %v73 = vrot.slane %v45, %v72
  %v74 = vcombine.high %v52, %v52
  %v75 = vcombine.high %v59, %v59
  %v76 = vcombine.high %v66, %v66
  %v77 = vcombine.high %v73, %v73
  %v78 = vlaneseq
  %v79 = vshrl.u32 %v78, 7
  %v80 = vsub.s32 0, %v79
  %v81 = vrot.slane %v52, %v80
  %v82 = vlaneseq
  %v83 = vshrl.u32 %v82, 7
  %v84 = vsub.s32 0, %v83
  %v85 = vrot.slane %v66, %v84
  %v86 = vlaneseq
  %v87 = vshrl.u32 %v86, 7
  %v88 = vsub.s32 0, %v87
  %v89 = vrot.slane %v74, %v88
  %v90 = vlaneseq
  %v91 = vshrl.u32 %v90, 7
  %v92 = vsub.s32 0, %v91
  %v93 = vrot.slane %v76, %v92
  %v94 = vlaneseq
  %v95 = vshrl.u32 %v94, 7
  %v96 = vsub.s32 0, %v95
  %v97 = vrot.slane %v59, %v96
  %v98 = vlaneseq
  %v99 = vshrl.u32 %v98, 7
  %v100 = vsub.s32 0, %v99
  %v101 = vrot.slane %v73, %v100
  %v102 = vlaneseq
  %v103 = vshrl.u32 %v102, 7
  %v104 = vsub.s32 0, %v103
  %v105 = vrot.slane %v75, %v104
  %v106 = vlaneseq
  %v107 = vshrl.u32 %v106, 7
  %v108 = vsub.s32 0, %v107
  %v109 = vrot.slane %v77, %v108
  %v118 = vadd.f32 %v19, %v81
  %v119 = vadd.f32 %v20, %v85
  %v120 = vadd.f32 %v21, %v89
  %v121 = vadd.f32 %v22, %v93
  %v122 = vadd.f32 %v23, %v97
  %v123 = vadd.f32 %v24, %v101
  %v124 = vadd.f32 %v25, %v105
  %v125 = vadd.f32 %v26, %v109
  %vm126 = vcmask 254976
  %127 = vst.msk [vmem:[%s2] sm:$0x3] %vm126, %v118
  %128 = vst.msk [vmem:[%s2 + $0x2] sm:$0x3] %vm126, %v119
  %129 = vst.msk [vmem:[%s2 + $0x4] sm:$0x3] %vm126, %v120
  %130 = vst.msk [vmem:[%s2 + $0x6] sm:$0x3] %vm126, %v121
  %131 = vst.msk [vmem:[%s2 + $0x8] sm:$0x3] %vm126, %v122
  %132 = vst.msk [vmem:[%s2 + $0xa] sm:$0x3] %vm126, %v123
  %133 = vst.msk [vmem:[%s2 + $0xc] sm:$0x3] %vm126, %v124
  %134 = vst.msk [vmem:[%s2 + $0xe] sm:$0x3] %vm126, %v125
  // Predicated region
  $region10: #{transformer_forward.10} parent=0 // pred_check
    _
  $region11: #{transformer_forward.10} parent=0 // pred_check_branch
    %136 = sbr.rel (0) target = $region13
  $region12: #{transformer_forward.10} parent=0 // pred_region
    _
  $region13: #{transformer_forward.10} parent=0 // pred_fallthru
    _
  // Predicated region
  $region14: #{transformer_forward.10} parent=0 // pred_check
    _
  $region15: #{transformer_forward.10} parent=0 // pred_check_branch
    %138 = sbr.rel (0) target = $region17
  $region16: #{transformer_forward.10} parent=0 // pred_region
    _
  $region17: #{transformer_forward.10} parent=0 // pred_fallthru
    _

// kernel: transformer_forward.11
$region0: #{transformer_forward.11}
  #allocation0 [shape = 'u32[]', space=smem, size = 0x4, offset = 0x4, fixed_abs, tag = 'smem constant byte address 0x4 - core index']
  #allocation1 [shape = 'u32[144,128]{1,0:T(1,128)}', space=vmem, size = 0x12000, scoped, tag = 'internal scratch']
  #allocation2 [shape = 'f32[16,128]{1,0:T(8,128)}', space=vmem, size = 0x2000, scoped, tag = 'scratch operand']
  %s0 = inlined_call_operand.vmem [shape: f32[16,128], index: 0, kind: input, shape index: {}]
  %s1 = inlined_call_operand.vmem [shape: f32[128,128], index: 1, kind: input, shape index: {}]
  %s2 = inlined_call_operand.vmem [shape: f32[1,128], index: 2, kind: input, shape index: {}]
  %s3 = inlined_call_operand.vmem [shape: f32[16,128], index: 3, kind: output, shape index: {}]
  %s4 = sld [smem:[#allocation0]]
  $region30: #{transformer_forward.11} parent=0
    _
  %s6 = ssub.s32 1, %s4
  %s7 = scalar_select 0, %s6, %s4
  // Predicated region
  $region2: #{transformer_forward.11} parent=0 // pred_check
    _
  $region3: #{transformer_forward.11} parent=0 // pred_check_branch
    %9 = sbr.rel (0) target = $region5
  $region4: #{transformer_forward.11} parent=0 // pred_region
    _
  $region5: #{transformer_forward.11} parent=0 // pred_fallthru
    _
  // Predicated region
  $region6: #{transformer_forward.11} parent=0 // pred_check
    _
  $region7: #{transformer_forward.11} parent=0 // pred_check_branch
    %11 = sbr.rel (0) target = $region9
  $region8: #{transformer_forward.11} parent=0 // pred_region
    _
  $region9: #{transformer_forward.11} parent=0 // pred_fallthru
    _
  // Predicated region
  $region10: #{transformer_forward.11} parent=0 // pred_check
    _
  $region11: #{transformer_forward.11} parent=0 // pred_check_branch
    %13 = sbr.rel (0) target = $region13
  $region12: #{transformer_forward.11} parent=0 // pred_region
    _
  $region13: #{transformer_forward.11} parent=0 // pred_fallthru
    _
  %p14 = scmp.eq.s32.totalorder 0, 0
  // Predicated region
  $region14: #{transformer_forward.11} parent=0 // pred_check
    %p15 = pneg %p14
  $region15: #{transformer_forward.11} parent=0 // pred_check_branch
    %17 = sbr.rel (%p15) target = $region17
  $region16: #{transformer_forward.11} parent=0 // pred_region
    %18 = vst [vmem:[#allocation2] sm:$0xff] 0.0
    %19 = vst [vmem:[#allocation2 + $0x8] sm:$0xff] 0.0
  $region17: #{transformer_forward.11} parent=0 // pred_fallthru
    _
  %v20 = vld [vmem:[#allocation2] sm:$0xff]
  %v21 = vld [vmem:[#allocation2 + $0x8] sm:$0xff]
  %v22 = vld [vmem:[%s0] sm:$0xff]
  %v23 = vld [vmem:[%s0 + $0x8] sm:$0xff]
  %v24 = vld [vmem:[%s1] sm:$0xff]
  %v25 = vld [vmem:[%s1 + $0x8] sm:$0xff]
  %v26 = vld [vmem:[%s1 + $0x10] sm:$0xff]
  %v27 = vld [vmem:[%s1 + $0x18] sm:$0xff]
  %v28 = vld [vmem:[%s1 + $0x20] sm:$0xff]
  %v29 = vld [vmem:[%s1 + $0x28] sm:$0xff]
  %v30 = vld [vmem:[%s1 + $0x30] sm:$0xff]
  %v31 = vld [vmem:[%s1 + $0x38] sm:$0xff]
  %v32 = vld [vmem:[%s1 + $0x40] sm:$0xff]
  %v33 = vld [vmem:[%s1 + $0x48] sm:$0xff]
  %v34 = vld [vmem:[%s1 + $0x50] sm:$0xff]
  %v35 = vld [vmem:[%s1 + $0x58] sm:$0xff]
  %v36 = vld [vmem:[%s1 + $0x60] sm:$0xff]
  %v37 = vld [vmem:[%s1 + $0x68] sm:$0xff]
  %v38 = vld [vmem:[%s1 + $0x70] sm:$0xff]
  %v39 = vld [vmem:[%s1 + $0x78] sm:$0xff]
  %40 = vmatprep.subr.mxu0 0.0
  %41 = vmatpush1.msra.mxu0 %v24
  %42 = vmatprep.subr.mxu0 0.0
  %43 = vmatpush1.msra.mxu0 %v25
  %44 = vmatprep.subr.mxu0 0.0
  %45 = vmatpush1.msra.mxu0 %v26
  %46 = vmatprep.subr.mxu0 0.0
  %47 = vmatpush1.msra.mxu0 %v27
  %48 = vmatprep.subr.mxu0 0.0
  %49 = vmatpush1.msra.mxu0 %v28
  %50 = vmatprep.subr.mxu0 0.0
  %51 = vmatpush1.msra.mxu0 %v29
  %52 = vmatprep.subr.mxu0 0.0
  %53 = vmatpush1.msra.mxu0 %v30
  %54 = vmatprep.subr.mxu0 0.0
  %55 = vmatpush1.msra.mxu0 %v31
  %56 = vmatprep.subr.mxu0 0.0
  %57 = vmatpush1.msra.mxu0 %v32
  %58 = vmatprep.subr.mxu0 0.0
  %59 = vmatpush1.msra.mxu0 %v33
  %60 = vmatprep.subr.mxu0 0.0
  %61 = vmatpush1.msra.mxu0 %v34
  %62 = vmatprep.subr.mxu0 0.0
  %63 = vmatpush1.msra.mxu0 %v35
  %64 = vmatprep.subr.mxu0 0.0
  %65 = vmatpush1.msra.mxu0 %v36
  %66 = vmatprep.subr.mxu0 0.0
  %67 = vmatpush1.msra.mxu0 %v37
  %68 = vmatprep.subr.mxu0 0.0
  %69 = vmatpush1.msra.mxu0 %v38
  %70 = vmatprep.subr.mxu0 0.0
  %71 = vmatpush1.msra.mxu0 %v39
  %72 = vmatprep.subr.mxu0 0.0
  %73 = vmatpush1.msra.mxu0 0.0
  %74 = vmatprep.subr.mxu0 0.0
  %75 = vmatpush1.msra.mxu0 0.0
  %76 = vmatprep.subr.mxu0 0.0
  %77 = vmatpush1.msra.mxu0 0.0
  %78 = vmatprep.subr.mxu0 0.0
  %79 = vmatpush1.msra.mxu0 0.0
  %80 = vmatprep.subr.mxu0 0.0
  %81 = vmatpush1.msra.mxu0 0.0
  %82 = vmatprep.subr.mxu0 0.0
  %83 = vmatpush1.msra.mxu0 0.0
  %84 = vmatprep.subr.mxu0 0.0
  %85 = vmatpush1.msra.mxu0 0.0
  %86 = vmatprep.subr.mxu0 0.0
  %87 = vmatpush1.msra.mxu0 0.0
  %88 = vmatprep.subr.mxu0 0.0
  %89 = vmatpush1.msra.mxu0 0.0
  %90 = vmatprep.subr.mxu0 0.0
  %91 = vmatpush1.msra.mxu0 0.0
  %92 = vmatprep.subr.mxu0 0.0
  %93 = vmatpush1.msra.mxu0 0.0
  %94 = vmatprep.subr.mxu0 0.0
  %95 = vmatpush1.msra.mxu0 0.0
  %96 = vmatprep.subr.mxu0 0.0
  %97 = vmatpush1.msra.mxu0 0.0
  %98 = vmatprep.subr.mxu0 0.0
  %99 = vmatpush1.msra.mxu0 0.0
  %100 = vmatprep.subr.mxu0 0.0
  %101 = vmatpush1.msra.mxu0 0.0
  %102 = vmatprep.subr.mxu0 0.0
  %103 = vmatpush1.msra.mxu0 0.0
  %104 = vmatprep.mubr.f32.mxu0 0.0
  %105 = vmatmul.mubr.f32.gmra.mrb[0].mxu0 %v22
  %v106 = vpop.f32.mrb[0].mxu0
  %v107 = vadd.f32 0.0, %v106
  %v108 = vpop.f32.mrb[0].mxu0
  %109 = vmatprep.mubr.f32.mxu0 0.0
  %110 = vmatmul.mubr.f32.gmra.mrb[0].mxu0 %v23
  %v111 = vpop.f32.mrb[0].mxu0
  %v112 = vadd.f32 0.0, %v111
  %v113 = vpop.f32.mrb[0].mxu0
  %114 = vdwg.mxu0
  %v115 = vadd.f32 %v20, %v107
  %v116 = vadd.f32 %v21, %v112
  %117 = vst [vmem:[#allocation2] sm:$0xff] %v115
  %118 = vst [vmem:[#allocation2 + $0x8] sm:$0xff] %v116
  // Predicated region
  $region18: #{transformer_forward.11} parent=0 // pred_check
    %p119 = pneg %p14
  $region19: #{transformer_forward.11} parent=0 // pred_check_branch
    %121 = sbr.rel (%p119) target = $region21
  $region20: #{transformer_forward.11} parent=0 // pred_region
    %v122 = vld [vmem:[#allocation2] sm:$0xff]
    %v123 = vld [vmem:[#allocation2 + $0x8] sm:$0xff]
    %v124 = vld [vmem:[%s2] sm:$0x1]
    %v126 = vlaneseq
    %v127 = vshrl.u32 %v126, 7
    %v128 = vsub.s32 0, %v127
    %v129 = vrot.slane %v124, %v128
    %v131 = vadd.f32 %v122, %v129
    %v132 = vadd.f32 %v123, %v129
    %133 = vst [vmem:[%s3] sm:$0xff] %v131
    %134 = vst [vmem:[%s3 + $0x8] sm:$0xff] %v132
  $region21: #{transformer_forward.11} parent=0 // pred_fallthru
    _
  // Predicated region
  $region22: #{transformer_forward.11} parent=0 // pred_check
    _
  $region23: #{transformer_forward.11} parent=0 // pred_check_branch
    %136 = sbr.rel (0) target = $region25
  $region24: #{transformer_forward.11} parent=0 // pred_region
    _
  $region25: #{transformer_forward.11} parent=0 // pred_fallthru
    _
  // Predicated region
  $region26: #{transformer_forward.11} parent=0 // pred_check
    _
  $region27: #{transformer_forward.11} parent=0 // pred_check_branch
    %138 = sbr.rel (0) target = $region29
  $region28: #{transformer_forward.11} parent=0 // pred_region
    _
  $region29: #{transformer_forward.11} parent=0 // pred_fallthru
    _

// kernel: transformer_forward.12
$region0: #{transformer_forward.12}
  #allocation0 [shape = 'u32[]', space=smem, size = 0x4, offset = 0x4, fixed_abs, tag = 'smem constant byte address 0x4 - core index']
  #allocation1 [shape = 'u32[144,128]{1,0:T(1,128)}', space=vmem, size = 0x12000, scoped, tag = 'internal scratch']
  %s0 = inlined_call_operand.vmem [shape: f32[2,4,8,8], index: 0, kind: input, shape index: {}]
  %s1 = inlined_call_operand.vmem [shape: f32[2,4,8,8], index: 1, kind: input, shape index: {}]
  %s2 = inlined_call_operand.vmem [shape: f32[2,4,8,8], index: 2, kind: input, shape index: {}]
  %s3 = inlined_call_operand.vmem [shape: f32[8,8], index: 3, kind: input, shape index: {}]
  %s4 = inlined_call_operand.vmem [shape: f32[2,4,8,8], index: 4, kind: output, shape index: {}]
  %s5 = sld [smem:[#allocation0]]
  $region49: #{transformer_forward.12} parent=0
    _
  %s7 = ssub.s32 1, %s5
  %s8 = scalar_select 0, %s7, %s5
  loop: start=0, step=1, limit=4
  $region2: #{transformer_forward.12} parent=0 // loop_pre_header
    _
  $region3: #{transformer_forward.12} parent=0 // loop_header
    %s10 = sphi 0, %s14
    %p11 = scmp.ge.s32.totalorder %s10, 4
    %s20 = sphi 0, %s22
    %s23 = sphi 0, %s20
    %s24 = sphi 0, %s23
    %s40 = sphi 0, %s24
    %s46 = sphi 0, %s48
    %s49 = sphi 0, %s46
    %s50 = sphi 0, %s49
    %s66 = sphi 0, %s50
    %s72 = sphi 0, %s74
    %s75 = sphi 0, %s72
    %s76 = sphi 0, %s75
    %s92 = sphi 0, %s76
    %s96 = sphi 0, %s96
    %s98 = sphi 0, %s96
    %s99 = sphi 0, %s98
    %s113 = sphi 0, %s99
    %s119 = sphi 0, %s121
    %s122 = sphi 0, %s119
    %s123 = sphi 0, %s122
    %s139 = sphi 0, %s123
  $region4: #{transformer_forward.12} parent=0 // loop_header_branch
    %13 = sbr.rel (%p11) target = $region8
  $region5: #{transformer_forward.12} parent=0 // loop_body
    %s15 = ssub.s32 %s10, 1
    %s16 = ssub.s32 %s10, 2
    %s17 = sadd.s32 %s10, 1
    %s18 = ssub.s32 %s10, %s17
    %p19 = scmp.eq.s32.totalorder %s18, 0
    %s21 = sadd.s32 %s20, 1
    %s22 = scalar_select %p19, %s20, %s21
    %p25 = pneg %p19
    %p26 = scmp.eq.s32.totalorder %s10, 1
    %p27 = por %p25, %p26
    %p28 = scmp.ne.s32.totalorder %s20, %s23
    %p29 = scmp.eq.s32.totalorder %s10, 0
    %p30 = por %p28, %p29
    %p31 = scmp.ne.s32.totalorder %s20, %s23
    %p32 = scmp.eq.s32.totalorder %s15, 1
    %p33 = por %p31, %p32
    %p34 = scmp.ne.s32.totalorder %s23, %s24
    %p35 = scmp.eq.s32.totalorder %s15, 0
    %p36 = por %p34, %p35
    %p37 = scmp.ne.s32.totalorder %s23, %s24
    %p38 = scmp.eq.s32.totalorder %s16, 1
    %p39 = por %p37, %p38
    %p41 = scmp.ne.s32.totalorder %s24, %s40
    %p42 = scmp.eq.s32.totalorder %s16, 0
    %p43 = por %p41, %p42
    %s44 = ssub.s32 %s10, %s17
    %p45 = scmp.eq.s32.totalorder %s44, 0
    %s47 = sadd.s32 %s46, 1
    %s48 = scalar_select %p45, %s46, %s47
    %p51 = pneg %p45
    %p52 = scmp.eq.s32.totalorder %s10, 1
    %p53 = por %p51, %p52
    %p54 = scmp.ne.s32.totalorder %s46, %s49
    %p55 = scmp.eq.s32.totalorder %s10, 0
    %p56 = por %p54, %p55
    %p57 = scmp.ne.s32.totalorder %s46, %s49
    %p58 = scmp.eq.s32.totalorder %s15, 1
    %p59 = por %p57, %p58
    %p60 = scmp.ne.s32.totalorder %s49, %s50
    %p61 = scmp.eq.s32.totalorder %s15, 0
    %p62 = por %p60, %p61
    %p63 = scmp.ne.s32.totalorder %s49, %s50
    %p64 = scmp.eq.s32.totalorder %s16, 1
    %p65 = por %p63, %p64
    %p67 = scmp.ne.s32.totalorder %s50, %s66
    %p68 = scmp.eq.s32.totalorder %s16, 0
    %p69 = por %p67, %p68
    %s70 = ssub.s32 %s10, %s17
    %p71 = scmp.eq.s32.totalorder %s70, 0
    %s73 = sadd.s32 %s72, 1
    %s74 = scalar_select %p71, %s72, %s73
    %p77 = pneg %p71
    %p78 = scmp.eq.s32.totalorder %s10, 1
    %p79 = por %p77, %p78
    %p80 = scmp.ne.s32.totalorder %s72, %s75
    %p81 = scmp.eq.s32.totalorder %s10, 0
    %p82 = por %p80, %p81
    %p83 = scmp.ne.s32.totalorder %s72, %s75
    %p84 = scmp.eq.s32.totalorder %s15, 1
    %p85 = por %p83, %p84
    %p86 = scmp.ne.s32.totalorder %s75, %s76
    %p87 = scmp.eq.s32.totalorder %s15, 0
    %p88 = por %p86, %p87
    %p89 = scmp.ne.s32.totalorder %s75, %s76
    %p90 = scmp.eq.s32.totalorder %s16, 1
    %p91 = por %p89, %p90
    %p93 = scmp.ne.s32.totalorder %s76, %s92
    %p94 = scmp.eq.s32.totalorder %s16, 0
    %p95 = por %p93, %p94
    %s97 = sadd.s32 %s96, 1
    %p100 = scmp.eq.s32.totalorder %s10, 1
    %p101 = scmp.ne.s32.totalorder %s96, %s98
    %p102 = scmp.eq.s32.totalorder %s10, 0
    %p103 = por %p101, %p102
    %p104 = scmp.ne.s32.totalorder %s96, %s98
    %p105 = scmp.eq.s32.totalorder %s15, 1
    %p106 = por %p104, %p105
    %p107 = scmp.ne.s32.totalorder %s98, %s99
    %p108 = scmp.eq.s32.totalorder %s15, 0
    %p109 = por %p107, %p108
    %p110 = scmp.ne.s32.totalorder %s98, %s99
    %p111 = scmp.eq.s32.totalorder %s16, 1
    %p112 = por %p110, %p111
    %p114 = scmp.ne.s32.totalorder %s99, %s113
    %p115 = scmp.eq.s32.totalorder %s16, 0
    %p116 = por %p114, %p115
    %s117 = ssub.s32 %s10, %s17
    %p118 = scmp.eq.s32.totalorder %s117, 0
    %s120 = sadd.s32 %s119, 1
    %s121 = scalar_select %p118, %s119, %s120
    %p124 = pneg %p118
    %p125 = scmp.eq.s32.totalorder %s10, 1
    %p126 = por %p124, %p125
    %p127 = scmp.ne.s32.totalorder %s119, %s122
    %p128 = scmp.eq.s32.totalorder %s10, 0
    %p129 = por %p127, %p128
    %p130 = scmp.ne.s32.totalorder %s119, %s122
    %p131 = scmp.eq.s32.totalorder %s15, 1
    %p132 = por %p130, %p131
    %p133 = scmp.ne.s32.totalorder %s122, %s123
    %p134 = scmp.eq.s32.totalorder %s15, 0
    %p135 = por %p133, %p134
    %p136 = scmp.ne.s32.totalorder %s122, %s123
    %p137 = scmp.eq.s32.totalorder %s16, 1
    %p138 = por %p136, %p137
    %p140 = scmp.ne.s32.totalorder %s123, %s139
    %p141 = scmp.eq.s32.totalorder %s16, 0
    %p142 = por %p140, %p141
    %p143 = scmp.le.s32.totalorder 1, %s10
    %p144 = scmp.lt.s32.totalorder %s10, 3
    %p145 = pnand %p143, %p144
    %p146 = pneg %p145
    // Predicated region
    $region9: #{transformer_forward.12} parent=5 // pred_check
      _
    $region10: #{transformer_forward.12} parent=5 // pred_check_branch
      %148 = sbr.rel (%p145) target = $region12
    $region11: #{transformer_forward.12} parent=5 // pred_region
      %s149 = ssub.s32 %s10, 1
      // Predicated region
      $region13: #{transformer_forward.12} parent=11 // pred_check
        %p150 = pneg %p109
      $region14: #{transformer_forward.12} parent=11 // pred_check_branch
        %152 = sbr.rel (%p150) target = $region16
      $region15: #{transformer_forward.12} parent=11 // pred_region
        _
      $region16: #{transformer_forward.12} parent=11 // pred_fallthru
        _
    $region12: #{transformer_forward.12} parent=5 // pred_fallthru
      _
    %p153 = scmp.lt.s32.totalorder %s10, 2
    // Predicated region
    $region17: #{transformer_forward.12} parent=5 // pred_check
      %p154 = pneg %p153
    $region18: #{transformer_forward.12} parent=5 // pred_check_branch
      %156 = sbr.rel (%p154) target = $region20
    $region19: #{transformer_forward.12} parent=5 // pred_region
      // Predicated region
      $region21: #{transformer_forward.12} parent=19 // pred_check
        %p157 = pneg %p30
      $region22: #{transformer_forward.12} parent=19 // pred_check_branch
        %159 = sbr.rel (%p157) target = $region24
      $region23: #{transformer_forward.12} parent=19 // pred_region
        %p160 = scmp.lt.s32.totalorder %s10, 1
        %s161 = scalar_select %p160, %s10, 1
        %s162 = smul.addr %s161, 4
        %s163 = smul.addr %s162, 8
        %s164 = scalar_lea.vmem %s0, %s163
      $region24: #{transformer_forward.12} parent=19 // pred_fallthru
        _
      // Predicated region
      $region25: #{transformer_forward.12} parent=19 // pred_check
        %p165 = pneg %p56
      $region26: #{transformer_forward.12} parent=19 // pred_check_branch
        %167 = sbr.rel (%p165) target = $region28
      $region27: #{transformer_forward.12} parent=19 // pred_region
        %p168 = scmp.lt.s32.totalorder %s10, 1
        %s169 = scalar_select %p168, %s10, 1
        %s170 = smul.addr %s169, 4
        %s171 = smul.addr %s170, 8
        %s172 = scalar_lea.vmem %s1, %s171
      $region28: #{transformer_forward.12} parent=19 // pred_fallthru
        _
      // Predicated region
      $region29: #{transformer_forward.12} parent=19 // pred_check
        %p173 = pneg %p82
      $region30: #{transformer_forward.12} parent=19 // pred_check_branch
        %175 = sbr.rel (%p173) target = $region32
      $region31: #{transformer_forward.12} parent=19 // pred_region
        %p176 = scmp.lt.s32.totalorder %s10, 1
        %s177 = scalar_select %p176, %s10, 1
        %s178 = smul.addr %s177, 4
        %s179 = smul.addr %s178, 8
        %s180 = scalar_lea.vmem %s2, %s179
      $region32: #{transformer_forward.12} parent=19 // pred_fallthru
        _
    $region20: #{transformer_forward.12} parent=5 // pred_fallthru
      _
    %p181 = scmp.le.s32.totalorder 1, %s10
    %p182 = scmp.lt.s32.totalorder %s10, 3
    %p183 = pnand %p181, %p182
    %p184 = pneg %p183
    // Predicated region
    $region33: #{transformer_forward.12} parent=5 // pred_check
      _
    $region34: #{transformer_forward.12} parent=5 // pred_check_branch
      %186 = sbr.rel (%p183) target = $region36
    $region35: #{transformer_forward.12} parent=5 // pred_region
      %s187 = ssub.s32 %s10, 1
      %p188 = scmp.lt.s32.totalorder %s15, 1
      %s189 = scalar_select %p188, %s15, 1
      %s190 = smul.addr %s189, 4
      %s191 = smul.addr %s190, 8
      %s192 = scalar_lea.vmem %s0, %s191
      %p193 = pneg %p36
      %p194 = pneg %p33
      %p195 = scmp.lt.s32.totalorder %s15, 1
      %s196 = scalar_select %p195, %s15, 1
      %s197 = smul.addr %s196, 4
      %s198 = smul.addr %s197, 8
      %s199 = scalar_lea.vmem %s1, %s198
      %p200 = pneg %p62
      %p201 = pneg %p59
      %p202 = scmp.lt.s32.totalorder %s15, 1
      %s203 = scalar_select %p202, %s15, 1
      %s204 = smul.addr %s203, 4
      %s205 = smul.addr %s204, 8
      %s206 = scalar_lea.vmem %s2, %s205
      %p207 = pneg %p88
      %p208 = pneg %p85
      %p209 = pneg %p109
      %p210 = pneg %p106
      %p211 = pneg %p135
      %p212 = pneg %p132
      %p213 = scmp.lt.s32.totalorder %s15, 1
      %s214 = scalar_select %p213, %s15, 1
      %s215 = smul.addr %s214, 4
      %s216 = smul.addr %s215, 8
      %s217 = scalar_lea.vmem %s4, %s216
      %p218 = scmp.lt.s32.totalorder %s15, 1
      %s219 = scalar_select %p218, %s15, 1
      %s220 = smul.addr %s219, 4
      %s221 = smul.addr %s220, 8
      %s222 = scalar_lea.vmem %s0, %s221
      %p223 = scmp.lt.s32.totalorder %s15, 1
      %s224 = scalar_select %p223, %s15, 1
      %s225 = smul.addr %s224, 4
      %s226 = smul.addr %s225, 8
      %s227 = scalar_lea.vmem %s1, %s226
      %p228 = scmp.lt.s32.totalorder %s15, 1
      %s229 = scalar_select %p228, %s15, 1
      %s230 = smul.addr %s229, 4
      %s231 = smul.addr %s230, 8
      %s232 = scalar_lea.vmem %s2, %s231
      %p233 = scmp.lt.s32.totalorder %s15, 1
      %s234 = scalar_select %p233, %s15, 1
      %s235 = smul.addr %s234, 4
      %s236 = smul.addr %s235, 8
      %s237 = scalar_lea.vmem %s4, %s236
      %v238 = vld [vmem:[%s222] sm:$0xff]
      %v239 = vld [vmem:[%s222 + $0x8] sm:$0xff]
      %v240 = vld [vmem:[%s222 + $0x10] sm:$0xff]
      %v241 = vld [vmem:[%s222 + $0x18] sm:$0xff]
      %v242 = vld [vmem:[%s227] sm:$0xff]
      %v243 = vld [vmem:[%s227 + $0x8] sm:$0xff]
      %v244 = vld [vmem:[%s227 + $0x10] sm:$0xff]
      %v245 = vld [vmem:[%s227 + $0x18] sm:$0xff]
      %v246 = vld [vmem:[%s232] sm:$0xff]
      %v247 = vld [vmem:[%s232 + $0x8] sm:$0xff]
      %v248 = vld [vmem:[%s232 + $0x10] sm:$0xff]
      %v249 = vld [vmem:[%s232 + $0x18] sm:$0xff]
      %vm250 = vcmask 64512
      %v252 = vsel %vm250, %v238, 0
      %v255 = vsel %vm250, %v242, 0
      %257 = vmatprep.subr.mxu0 0.0
      %258 = vmatpush1.xpose.msra.mxu0 %v255
      %259 = vmatprep.subr.mxu0 0.0
      %260 = vmatpush1.xpose.msra.mxu0 0.0
      %261 = vmatprep.subr.mxu0 0.0
      %262 = vmatpush1.xpose.msra.mxu0 0.0
      %263 = vmatprep.subr.mxu0 0.0
      %264 = vmatpush1.xpose.msra.mxu0 0.0
      %265 = vmatprep.subr.mxu0 0.0
      %266 = vmatpush1.xpose.msra.mxu0 0.0
      %267 = vmatprep.subr.mxu0 0.0
      %268 = vmatpush1.xpose.msra.mxu0 0.0
      %269 = vmatprep.subr.mxu0 0.0
      %270 = vmatpush1.xpose.msra.mxu0 0.0
      %271 = vmatprep.subr.mxu0 0.0
      %272 = vmatpush1.xpose.msra.mxu0 0.0
      %273 = vmatprep.subr.mxu0 0.0
      %274 = vmatpush1.xpose.msra.mxu0 0.0
      %275 = vmatprep.subr.mxu0 0.0
      %276 = vmatpush1.xpose.msra.mxu0 0.0
      %277 = vmatprep.subr.mxu0 0.0
      %278 = vmatpush1.xpose.msra.mxu0 0.0
      %279 = vmatprep.subr.mxu0 0.0
      %280 = vmatpush1.xpose.msra.mxu0 0.0
      %281 = vmatprep.subr.mxu0 0.0
      %282 = vmatpush1.xpose.msra.mxu0 0.0
      %283 = vmatprep.subr.mxu0 0.0
      %284 = vmatpush1.xpose.msra.mxu0 0.0
      %285 = vmatprep.subr.mxu0 0.0
      %286 = vmatpush1.xpose.msra.mxu0 0.0
      %287 = vmatprep.subr.mxu0 0.0
      %288 = vmatpush1.xpose.msra.mxu0 0.0
      %289 = vmatprep.subr.mxu0 0.0
      %290 = vmatpush1.xpose.msra.mxu0 0.0
      %291 = vmatprep.subr.mxu0 0.0
      %292 = vmatpush1.xpose.msra.mxu0 0.0
      %293 = vmatprep.subr.mxu0 0.0
      %294 = vmatpush1.xpose.msra.mxu0 0.0
      %295 = vmatprep.subr.mxu0 0.0
      %296 = vmatpush1.xpose.msra.mxu0 0.0
      %297 = vmatprep.subr.mxu0 0.0
      %298 = vmatpush1.xpose.msra.mxu0 0.0
      %299 = vmatprep.subr.mxu0 0.0
      %300 = vmatpush1.xpose.msra.mxu0 0.0
      %301 = vmatprep.subr.mxu0 0.0
      %302 = vmatpush1.xpose.msra.mxu0 0.0
      %303 = vmatprep.subr.mxu0 0.0
      %304 = vmatpush1.xpose.msra.mxu0 0.0
      %305 = vmatprep.subr.mxu0 0.0
      %306 = vmatpush1.xpose.msra.mxu0 0.0
      %307 = vmatprep.subr.mxu0 0.0
      %308 = vmatpush1.xpose.msra.mxu0 0.0
      %309 = vmatprep.subr.mxu0 0.0
      %310 = vmatpush1.xpose.msra.mxu0 0.0
      %311 = vmatprep.subr.mxu0 0.0
      %312 = vmatpush1.xpose.msra.mxu0 0.0
      %313 = vmatprep.subr.mxu0 0.0
      %314 = vmatpush1.xpose.msra.mxu0 0.0
      %315 = vmatprep.subr.mxu0 0.0
      %316 = vmatpush1.xpose.msra.mxu0 0.0
      %317 = vmatprep.subr.mxu0 0.0
      %318 = vmatpush1.xpose.msra.mxu0 0.0
      %319 = vmatprep.subr.mxu0 0.0
      %320 = vmatpush1.xpose.msra.mxu0 0.0
      %321 = vmatprep.mubr.f32.mxu0 0.0
      %322 = vmatmul.mubr.f32.gmra.mrb[0].mxu0 %v252
      %v323 = vpop.f32.mrb[0].mxu0
      %v324 = vadd.f32 0.0, %v323
      %v325 = vpop.f32.mrb[0].mxu0
      %326 = vdwg.mxu0
      %v328 = vsel %vm250, %v239, 0
      %v331 = vsel %vm250, %v243, 0
      %333 = vmatprep.subr.mxu0 0.0
      %334 = vmatpush1.xpose.msra.mxu0 %v331
      %335 = vmatprep.subr.mxu0 0.0
      %336 = vmatpush1.xpose.msra.mxu0 0.0
      %337 = vmatprep.subr.mxu0 0.0
      %338 = vmatpush1.xpose.msra.mxu0 0.0
      %339 = vmatprep.subr.mxu0 0.0
      %340 = vmatpush1.xpose.msra.mxu0 0.0
      %341 = vmatprep.subr.mxu0 0.0
      %342 = vmatpush1.xpose.msra.mxu0 0.0
      %343 = vmatprep.subr.mxu0 0.0
      %344 = vmatpush1.xpose.msra.mxu0 0.0
      %345 = vmatprep.subr.mxu0 0.0
      %346 = vmatpush1.xpose.msra.mxu0 0.0
      %347 = vmatprep.subr.mxu0 0.0
      %348 = vmatpush1.xpose.msra.mxu0 0.0
      %349 = vmatprep.subr.mxu0 0.0
      %350 = vmatpush1.xpose.msra.mxu0 0.0
      %351 = vmatprep.subr.mxu0 0.0
      %352 = vmatpush1.xpose.msra.mxu0 0.0
      %353 = vmatprep.subr.mxu0 0.0
      %354 = vmatpush1.xpose.msra.mxu0 0.0
      %355 = vmatprep.subr.mxu0 0.0
      %356 = vmatpush1.xpose.msra.mxu0 0.0
      %357 = vmatprep.subr.mxu0 0.0
      %358 = vmatpush1.xpose.msra.mxu0 0.0
      %359 = vmatprep.subr.mxu0 0.0
      %360 = vmatpush1.xpose.msra.mxu0 0.0
      %361 = vmatprep.subr.mxu0 0.0
      %362 = vmatpush1.xpose.msra.mxu0 0.0
      %363 = vmatprep.subr.mxu0 0.0
      %364 = vmatpush1.xpose.msra.mxu0 0.0
      %365 = vmatprep.subr.mxu0 0.0
      %366 = vmatpush1.xpose.msra.mxu0 0.0
      %367 = vmatprep.subr.mxu0 0.0
      %368 = vmatpush1.xpose.msra.mxu0 0.0
      %369 = vmatprep.subr.mxu0 0.0
      %370 = vmatpush1.xpose.msra.mxu0 0.0
      %371 = vmatprep.subr.mxu0 0.0
      %372 = vmatpush1.xpose.msra.mxu0 0.0
      %373 = vmatprep.subr.mxu0 0.0
      %374 = vmatpush1.xpose.msra.mxu0 0.0
      %375 = vmatprep.subr.mxu0 0.0
      %376 = vmatpush1.xpose.msra.mxu0 0.0
      %377 = vmatprep.subr.mxu0 0.0
      %378 = vmatpush1.xpose.msra.mxu0 0.0
      %379 = vmatprep.subr.mxu0 0.0
      %380 = vmatpush1.xpose.msra.mxu0 0.0
      %381 = vmatprep.subr.mxu0 0.0
      %382 = vmatpush1.xpose.msra.mxu0 0.0
      %383 = vmatprep.subr.mxu0 0.0
      %384 = vmatpush1.xpose.msra.mxu0 0.0
      %385 = vmatprep.subr.mxu0 0.0
      %386 = vmatpush1.xpose.msra.mxu0 0.0
      %387 = vmatprep.subr.mxu0 0.0
      %388 = vmatpush1.xpose.msra.mxu0 0.0
      %389 = vmatprep.subr.mxu0 0.0
      %390 = vmatpush1.xpose.msra.mxu0 0.0
      %391 = vmatprep.subr.mxu0 0.0
      %392 = vmatpush1.xpose.msra.mxu0 0.0
      %393 = vmatprep.subr.mxu0 0.0
      %394 = vmatpush1.xpose.msra.mxu0 0.0
      %395 = vmatprep.subr.mxu0 0.0
      %396 = vmatpush1.xpose.msra.mxu0 0.0
      %397 = vmatprep.mubr.f32.mxu0 0.0
      %398 = vmatmul.mubr.f32.gmra.mrb[0].mxu0 %v328
      %v399 = vpop.f32.mrb[0].mxu0
      %v400 = vadd.f32 0.0, %v399
      %v401 = vpop.f32.mrb[0].mxu0
      %402 = vdwg.mxu0
      %v404 = vsel %vm250, %v240, 0
      %v407 = vsel %vm250, %v244, 0
      %409 = vmatprep.subr.mxu0 0.0
      %410 = vmatpush1.xpose.msra.mxu0 %v407
      %411 = vmatprep.subr.mxu0 0.0
      %412 = vmatpush1.xpose.msra.mxu0 0.0
      %413 = vmatprep.subr.mxu0 0.0
      %414 = vmatpush1.xpose.msra.mxu0 0.0
      %415 = vmatprep.subr.mxu0 0.0
      %416 = vmatpush1.xpose.msra.mxu0 0.0
      %417 = vmatprep.subr.mxu0 0.0
      %418 = vmatpush1.xpose.msra.mxu0 0.0
      %419 = vmatprep.subr.mxu0 0.0
      %420 = vmatpush1.xpose.msra.mxu0 0.0
      %421 = vmatprep.subr.mxu0 0.0
      %422 = vmatpush1.xpose.msra.mxu0 0.0
      %423 = vmatprep.subr.mxu0 0.0
      %424 = vmatpush1.xpose.msra.mxu0 0.0
      %425 = vmatprep.subr.mxu0 0.0
      %426 = vmatpush1.xpose.msra.mxu0 0.0
      %427 = vmatprep.subr.mxu0 0.0
      %428 = vmatpush1.xpose.msra.mxu0 0.0
      %429 = vmatprep.subr.mxu0 0.0
      %430 = vmatpush1.xpose.msra.mxu0 0.0
      %431 = vmatprep.subr.mxu0 0.0
      %432 = vmatpush1.xpose.msra.mxu0 0.0
      %433 = vmatprep.subr.mxu0 0.0
      %434 = vmatpush1.xpose.msra.mxu0 0.0
      %435 = vmatprep.subr.mxu0 0.0
      %436 = vmatpush1.xpose.msra.mxu0 0.0
      %437 = vmatprep.subr.mxu0 0.0
      %438 = vmatpush1.xpose.msra.mxu0 0.0
      %439 = vmatprep.subr.mxu0 0.0
      %440 = vmatpush1.xpose.msra.mxu0 0.0
      %441 = vmatprep.subr.mxu0 0.0
      %442 = vmatpush1.xpose.msra.mxu0 0.0
      %443 = vmatprep.subr.mxu0 0.0
      %444 = vmatpush1.xpose.msra.mxu0 0.0
      %445 = vmatprep.subr.mxu0 0.0
      %446 = vmatpush1.xpose.msra.mxu0 0.0
      %447 = vmatprep.subr.mxu0 0.0
      %448 = vmatpush1.xpose.msra.mxu0 0.0
      %449 = vmatprep.subr.mxu0 0.0
      %450 = vmatpush1.xpose.msra.mxu0 0.0
      %451 = vmatprep.subr.mxu0 0.0
      %452 = vmatpush1.xpose.msra.mxu0 0.0
      %453 = vmatprep.subr.mxu0 0.0
      %454 = vmatpush1.xpose.msra.mxu0 0.0
      %455 = vmatprep.subr.mxu0 0.0
      %456 = vmatpush1.xpose.msra.mxu0 0.0
      %457 = vmatprep.subr.mxu0 0.0
      %458 = vmatpush1.xpose.msra.mxu0 0.0
      %459 = vmatprep.subr.mxu0 0.0
      %460 = vmatpush1.xpose.msra.mxu0 0.0
      %461 = vmatprep.subr.mxu0 0.0
      %462 = vmatpush1.xpose.msra.mxu0 0.0
      %463 = vmatprep.subr.mxu0 0.0
      %464 = vmatpush1.xpose.msra.mxu0 0.0
      %465 = vmatprep.subr.mxu0 0.0
      %466 = vmatpush1.xpose.msra.mxu0 0.0
      %467 = vmatprep.subr.mxu0 0.0
      %468 = vmatpush1.xpose.msra.mxu0 0.0
      %469 = vmatprep.subr.mxu0 0.0
      %470 = vmatpush1.xpose.msra.mxu0 0.0
      %471 = vmatprep.subr.mxu0 0.0
      %472 = vmatpush1.xpose.msra.mxu0 0.0
      %473 = vmatprep.mubr.f32.mxu0 0.0
      %474 = vmatmul.mubr.f32.gmra.mrb[0].mxu0 %v404
      %v475 = vpop.f32.mrb[0].mxu0
      %v476 = vadd.f32 0.0, %v475
      %v477 = vpop.f32.mrb[0].mxu0
      %478 = vdwg.mxu0
      %v480 = vsel %vm250, %v241, 0
      %v483 = vsel %vm250, %v245, 0
      %485 = vmatprep.subr.mxu0 0.0
      %486 = vmatpush1.xpose.msra.mxu0 %v483
      %487 = vmatprep.subr.mxu0 0.0
      %488 = vmatpush1.xpose.msra.mxu0 0.0
      %489 = vmatprep.subr.mxu0 0.0
      %490 = vmatpush1.xpose.msra.mxu0 0.0
      %491 = vmatprep.subr.mxu0 0.0
      %492 = vmatpush1.xpose.msra.mxu0 0.0
      %493 = vmatprep.subr.mxu0 0.0
      %494 = vmatpush1.xpose.msra.mxu0 0.0
      %495 = vmatprep.subr.mxu0 0.0
      %496 = vmatpush1.xpose.msra.mxu0 0.0
      %497 = vmatprep.subr.mxu0 0.0
      %498 = vmatpush1.xpose.msra.mxu0 0.0
      %499 = vmatprep.subr.mxu0 0.0
      %500 = vmatpush1.xpose.msra.mxu0 0.0
      %501 = vmatprep.subr.mxu0 0.0
      %502 = vmatpush1.xpose.msra.mxu0 0.0
      %503 = vmatprep.subr.mxu0 0.0
      %504 = vmatpush1.xpose.msra.mxu0 0.0
      %505 = vmatprep.subr.mxu0 0.0
      %506 = vmatpush1.xpose.msra.mxu0 0.0
      %507 = vmatprep.subr.mxu0 0.0
      %508 = vmatpush1.xpose.msra.mxu0 0.0
      %509 = vmatprep.subr.mxu0 0.0
      %510 = vmatpush1.xpose.msra.mxu0 0.0
      %511 = vmatprep.subr.mxu0 0.0
      %512 = vmatpush1.xpose.msra.mxu0 0.0
      %513 = vmatprep.subr.mxu0 0.0
      %514 = vmatpush1.xpose.msra.mxu0 0.0
      %515 = vmatprep.subr.mxu0 0.0
      %516 = vmatpush1.xpose.msra.mxu0 0.0
      %517 = vmatprep.subr.mxu0 0.0
      %518 = vmatpush1.xpose.msra.mxu0 0.0
      %519 = vmatprep.subr.mxu0 0.0
      %520 = vmatpush1.xpose.msra.mxu0 0.0
      %521 = vmatprep.subr.mxu0 0.0
      %522 = vmatpush1.xpose.msra.mxu0 0.0
      %523 = vmatprep.subr.mxu0 0.0
      %524 = vmatpush1.xpose.msra.mxu0 0.0
      %525 = vmatprep.subr.mxu0 0.0
      %526 = vmatpush1.xpose.msra.mxu0 0.0
      %527 = vmatprep.subr.mxu0 0.0
      %528 = vmatpush1.xpose.msra.mxu0 0.0
      %529 = vmatprep.subr.mxu0 0.0
      %530 = vmatpush1.xpose.msra.mxu0 0.0
      %531 = vmatprep.subr.mxu0 0.0
      %532 = vmatpush1.xpose.msra.mxu0 0.0
      %533 = vmatprep.subr.mxu0 0.0
      %534 = vmatpush1.xpose.msra.mxu0 0.0
      %535 = vmatprep.subr.mxu0 0.0
      %536 = vmatpush1.xpose.msra.mxu0 0.0
      %537 = vmatprep.subr.mxu0 0.0
      %538 = vmatpush1.xpose.msra.mxu0 0.0
      %539 = vmatprep.subr.mxu0 0.0
      %540 = vmatpush1.xpose.msra.mxu0 0.0
      %541 = vmatprep.subr.mxu0 0.0
      %542 = vmatpush1.xpose.msra.mxu0 0.0
      %543 = vmatprep.subr.mxu0 0.0
      %544 = vmatpush1.xpose.msra.mxu0 0.0
      %545 = vmatprep.subr.mxu0 0.0
      %546 = vmatpush1.xpose.msra.mxu0 0.0
      %547 = vmatprep.subr.mxu0 0.0
      %548 = vmatpush1.xpose.msra.mxu0 0.0
      %549 = vmatprep.mubr.f32.mxu0 0.0
      %550 = vmatmul.mubr.f32.gmra.mrb[0].mxu0 %v480
      %v551 = vpop.f32.mrb[0].mxu0
      %v552 = vadd.f32 0.0, %v551
      %v553 = vpop.f32.mrb[0].mxu0
      %554 = vdwg.mxu0
      %v555 = vmul.f32 %v324, 0.35355338
      %v556 = vmul.f32 %v400, 0.35355338
      %v557 = vmul.f32 %v476, 0.35355338
      %v558 = vmul.f32 %v552, 0.35355338
      %v559 = vld [vmem:[%s3] sm:$0xff]
      %v560 = vadd.f32 %v555, %v559
      %v561 = vadd.f32 %v556, %v559
      %v562 = vadd.f32 %v557, %v559
      %v563 = vadd.f32 %v558, %v559
      %v564 = vsel %vm250, %v560, -inf
      %565 = vmax.xlane.f32.xlu0 %v564
      %v566 = vpop.xlane.xlu0 %565
      %v567 = vsel %vm250, %v561, -inf
      %568 = vmax.xlane.f32.xlu0 %v567
      %v569 = vpop.xlane.xlu0 %568
      %v570 = vsel %vm250, %v562, -inf
      %571 = vmax.xlane.f32.xlu0 %v570
      %v572 = vpop.xlane.xlu0 %571
      %v573 = vsel %vm250, %v563, -inf
      %574 = vmax.xlane.f32.xlu0 %v573
      %v575 = vpop.xlane.xlu0 %574
      %v576 = vsub.f32 %v560, %v566
      %v577 = vsub.f32 %v561, %v569
      %v578 = vsub.f32 %v562, %v572
      %v579 = vsub.f32 %v563, %v575
      %v580 = vmul.f32 %v576, 1.442695
      %v581 = vpow.pop %v580
      %v582 = vmul.f32 %v577, 1.442695
      %v583 = vpow.pop %v582
      %v584 = vmul.f32 %v578, 1.442695
      %v585 = vpow.pop %v584
      %v586 = vmul.f32 %v579, 1.442695
      %v587 = vpow.pop %v586
      %v588 = vsel %vm250, %v581, 0.0
      %589 = vadd.xlane.f32.xlu0 %v588
      %v590 = vpop.xlane.xlu0 %589
      %v591 = vsel %vm250, %v583, 0.0
      %592 = vadd.xlane.f32.xlu0 %v591
      %v593 = vpop.xlane.xlu0 %592
      %v594 = vsel %vm250, %v585, 0.0
      %595 = vadd.xlane.f32.xlu0 %v594
      %v596 = vpop.xlane.xlu0 %595
      %v597 = vsel %vm250, %v587, 0.0
      %598 = vadd.xlane.f32.xlu0 %v597
      %v599 = vpop.xlane.xlu0 %598
      %v600 = vrcp.pop %v590
      %v601 = vrcp.pop %v593
      %v602 = vrcp.pop %v596
      %v603 = vrcp.pop %v599
      %v604 = vmul.f32 %v581, %v600
      %v605 = vmul.f32 %v583, %v601
      %v606 = vmul.f32 %v585, %v602
      %v607 = vmul.f32 %v587, %v603
      %v609 = vsel %vm250, %v604, 0
      %611 = vmatprep.subr.mxu0 0.0
      %612 = vmatpush1.msra.mxu0 %v246
      %613 = vmatprep.subr.mxu0 0.0
      %614 = vmatpush1.msra.mxu0 0.0
      %615 = vmatprep.subr.mxu0 0.0
      %616 = vmatpush1.msra.mxu0 0.0
      %617 = vmatprep.subr.mxu0 0.0
      %618 = vmatpush1.msra.mxu0 0.0
      %619 = vmatprep.subr.mxu0 0.0
      %620 = vmatpush1.msra.mxu0 0.0
      %621 = vmatprep.subr.mxu0 0.0
      %622 = vmatpush1.msra.mxu0 0.0
      %623 = vmatprep.subr.mxu0 0.0
      %624 = vmatpush1.msra.mxu0 0.0
      %625 = vmatprep.subr.mxu0 0.0
      %626 = vmatpush1.msra.mxu0 0.0
      %627 = vmatprep.subr.mxu0 0.0
      %628 = vmatpush1.msra.mxu0 0.0
      %629 = vmatprep.subr.mxu0 0.0
      %630 = vmatpush1.msra.mxu0 0.0
      %631 = vmatprep.subr.mxu0 0.0
      %632 = vmatpush1.msra.mxu0 0.0
      %633 = vmatprep.subr.mxu0 0.0
      %634 = vmatpush1.msra.mxu0 0.0
      %635 = vmatprep.subr.mxu0 0.0
      %636 = vmatpush1.msra.mxu0 0.0
      %637 = vmatprep.subr.mxu0 0.0
      %638 = vmatpush1.msra.mxu0 0.0
      %639 = vmatprep.subr.mxu0 0.0
      %640 = vmatpush1.msra.mxu0 0.0
      %641 = vmatprep.subr.mxu0 0.0
      %642 = vmatpush1.msra.mxu0 0.0
      %643 = vmatprep.subr.mxu0 0.0
      %644 = vmatpush1.msra.mxu0 0.0
      %645 = vmatprep.subr.mxu0 0.0
      %646 = vmatpush1.msra.mxu0 0.0
      %647 = vmatprep.subr.mxu0 0.0
      %648 = vmatpush1.msra.mxu0 0.0
      %649 = vmatprep.subr.mxu0 0.0
      %650 = vmatpush1.msra.mxu0 0.0
      %651 = vmatprep.subr.mxu0 0.0
      %652 = vmatpush1.msra.mxu0 0.0
      %653 = vmatprep.subr.mxu0 0.0
      %654 = vmatpush1.msra.mxu0 0.0
      %655 = vmatprep.subr.mxu0 0.0
      %656 = vmatpush1.msra.mxu0 0.0
      %657 = vmatprep.subr.mxu0 0.0
      %658 = vmatpush1.msra.mxu0 0.0
      %659 = vmatprep.subr.mxu0 0.0
      %660 = vmatpush1.msra.mxu0 0.0
      %661 = vmatprep.subr.mxu0 0.0
      %662 = vmatpush1.msra.mxu0 0.0
      %663 = vmatprep.subr.mxu0 0.0
      %664 = vmatpush1.msra.mxu0 0.0
      %665 = vmatprep.subr.mxu0 0.0
      %666 = vmatpush1.msra.mxu0 0.0
      %667 = vmatprep.subr.mxu0 0.0
      %668 = vmatpush1.msra.mxu0 0.0
      %669 = vmatprep.subr.mxu0 0.0
      %670 = vmatpush1.msra.mxu0 0.0
      %671 = vmatprep.subr.mxu0 0.0
      %672 = vmatpush1.msra.mxu0 0.0
      %673 = vmatprep.subr.mxu0 0.0
      %674 = vmatpush1.msra.mxu0 0.0
      %675 = vmatprep.mubr.f32.mxu0 0.0
      %676 = vmatmul.mubr.f32.gmra.mrb[0].mxu0 %v609
      %v677 = vpop.f32.mrb[0].mxu0
      %v678 = vadd.f32 0.0, %v677
      %v679 = vpop.f32.mrb[0].mxu0
      %680 = vdwg.mxu0
      %v682 = vsel %vm250, %v605, 0
      %684 = vmatprep.subr.mxu0 0.0
      %685 = vmatpush1.msra.mxu0 %v247
      %686 = vmatprep.subr.mxu0 0.0
      %687 = vmatpush1.msra.mxu0 0.0
      %688 = vmatprep.subr.mxu0 0.0
      %689 = vmatpush1.msra.mxu0 0.0
      %690 = vmatprep.subr.mxu0 0.0
      %691 = vmatpush1.msra.mxu0 0.0
      %692 = vmatprep.subr.mxu0 0.0
      %693 = vmatpush1.msra.mxu0 0.0
      %694 = vmatprep.subr.mxu0 0.0
      %695 = vmatpush1.msra.mxu0 0.0
      %696 = vmatprep.subr.mxu0 0.0
      %697 = vmatpush1.msra.mxu0 0.0
      %698 = vmatprep.subr.mxu0 0.0
      %699 = vmatpush1.msra.mxu0 0.0
      %700 = vmatprep.subr.mxu0 0.0
      %701 = vmatpush1.msra.mxu0 0.0
      %702 = vmatprep.subr.mxu0 0.0
      %703 = vmatpush1.msra.mxu0 0.0
      %704 = vmatprep.subr.mxu0 0.0
      %705 = vmatpush1.msra.mxu0 0.0
      %706 = vmatprep.subr.mxu0 0.0
      %707 = vmatpush1.msra.mxu0 0.0
      %708 = vmatprep.subr.mxu0 0.0
      %709 = vmatpush1.msra.mxu0 0.0
      %710 = vmatprep.subr.mxu0 0.0
      %711 = vmatpush1.msra.mxu0 0.0
      %712 = vmatprep.subr.mxu0 0.0
      %713 = vmatpush1.msra.mxu0 0.0
      %714 = vmatprep.subr.mxu0 0.0
      %715 = vmatpush1.msra.mxu0 0.0
      %716 = vmatprep.subr.mxu0 0.0
      %717 = vmatpush1.msra.mxu0 0.0
      %718 = vmatprep.subr.mxu0 0.0
      %719 = vmatpush1.msra.mxu0 0.0
      %720 = vmatprep.subr.mxu0 0.0
      %721 = vmatpush1.msra.mxu0 0.0
      %722 = vmatprep.subr.mxu0 0.0
      %723 = vmatpush1.msra.mxu0 0.0
      %724 = vmatprep.subr.mxu0 0.0
      %725 = vmatpush1.msra.mxu0 0.0
      %726 = vmatprep.subr.mxu0 0.0
      %727 = vmatpush1.msra.mxu0 0.0
      %728 = vmatprep.subr.mxu0 0.0
      %729 = vmatpush1.msra.mxu0 0.0
      %730 = vmatprep.subr.mxu0 0.0
      %731 = vmatpush1.msra.mxu0 0.0
      %732 = vmatprep.subr.mxu0 0.0
      %733 = vmatpush1.msra.mxu0 0.0
      %734 = vmatprep.subr.mxu0 0.0
      %735 = vmatpush1.msra.mxu0 0.0
      %736 = vmatprep.subr.mxu0 0.0
      %737 = vmatpush1.msra.mxu0 0.0
      %738 = vmatprep.subr.mxu0 0.0
      %739 = vmatpush1.msra.mxu0 0.0
      %740 = vmatprep.subr.mxu0 0.0
      %741 = vmatpush1.msra.mxu0 0.0
      %742 = vmatprep.subr.mxu0 0.0
      %743 = vmatpush1.msra.mxu0 0.0
      %744 = vmatprep.subr.mxu0 0.0
      %745 = vmatpush1.msra.mxu0 0.0
      %746 = vmatprep.subr.mxu0 0.0
      %747 = vmatpush1.msra.mxu0 0.0
      %748 = vmatprep.mubr.f32.mxu0 0.0
      %749 = vmatmul.mubr.f32.gmra.mrb[0].mxu0 %v682
      %v750 = vpop.f32.mrb[0].mxu0
      %v751 = vadd.f32 0.0, %v750
      %v752 = vpop.f32.mrb[0].mxu0
      %753 = vdwg.mxu0
      %v755 = vsel %vm250, %v606, 0
      %757 = vmatprep.subr.mxu0 0.0
      %758 = vmatpush1.msra.mxu0 %v248
      %759 = vmatprep.subr.mxu0 0.0
      %760 = vmatpush1.msra.mxu0 0.0
      %761 = vmatprep.subr.mxu0 0.0
      %762 = vmatpush1.msra.mxu0 0.0
      %763 = vmatprep.subr.mxu0 0.0
      %764 = vmatpush1.msra.mxu0 0.0
      %765 = vmatprep.subr.mxu0 0.0
      %766 = vmatpush1.msra.mxu0 0.0
      %767 = vmatprep.subr.mxu0 0.0
      %768 = vmatpush1.msra.mxu0 0.0
      %769 = vmatprep.subr.mxu0 0.0
      %770 = vmatpush1.msra.mxu0 0.0
      %771 = vmatprep.subr.mxu0 0.0
      %772 = vmatpush1.msra.mxu0 0.0
      %773 = vmatprep.subr.mxu0 0.0
      %774 = vmatpush1.msra.mxu0 0.0
      %775 = vmatprep.subr.mxu0 0.0
      %776 = vmatpush1.msra.mxu0 0.0
      %777 = vmatprep.subr.mxu0 0.0
      %778 = vmatpush1.msra.mxu0 0.0
      %779 = vmatprep.subr.mxu0 0.0
      %780 = vmatpush1.msra.mxu0 0.0
      %781 = vmatprep.subr.mxu0 0.0
      %782 = vmatpush1.msra.mxu0 0.0
      %783 = vmatprep.subr.mxu0 0.0
      %784 = vmatpush1.msra.mxu0 0.0
      %785 = vmatprep.subr.mxu0 0.0
      %786 = vmatpush1.msra.mxu0 0.0
      %787 = vmatprep.subr.mxu0 0.0
      %788 = vmatpush1.msra.mxu0 0.0
      %789 = vmatprep.subr.mxu0 0.0
      %790 = vmatpush1.msra.mxu0 0.0
      %791 = vmatprep.subr.mxu0 0.0
      %792 = vmatpush1.msra.mxu0 0.0
      %793 = vmatprep.subr.mxu0 0.0
      %794 = vmatpush1.msra.mxu0 0.0
      %795 = vmatprep.subr.mxu0 0.0
      %796 = vmatpush1.msra.mxu0 0.0
      %797 = vmatprep.subr.mxu0 0.0
      %798 = vmatpush1.msra.mxu0 0.0
      %799 = vmatprep.subr.mxu0 0.0
      %800 = vmatpush1.msra.mxu0 0.0
      %801 = vmatprep.subr.mxu0 0.0
      %802 = vmatpush1.msra.mxu0 0.0
      %803 = vmatprep.subr.mxu0 0.0
      %804 = vmatpush1.msra.mxu0 0.0
      %805 = vmatprep.subr.mxu0 0.0
      %806 = vmatpush1.msra.mxu0 0.0
      %807 = vmatprep.subr.mxu0 0.0
      %808 = vmatpush1.msra.mxu0 0.0
      %809 = vmatprep.subr.mxu0 0.0
      %810 = vmatpush1.msra.mxu0 0.0
      %811 = vmatprep.subr.mxu0 0.0
      %812 = vmatpush1.msra.mxu0 0.0
      %813 = vmatprep.subr.mxu0 0.0
      %814 = vmatpush1.msra.mxu0 0.0
      %815 = vmatprep.subr.mxu0 0.0
      %816 = vmatpush1.msra.mxu0 0.0
      %817 = vmatprep.subr.mxu0 0.0
      %818 = vmatpush1.msra.mxu0 0.0
      %819 = vmatprep.subr.mxu0 0.0
      %820 = vmatpush1.msra.mxu0 0.0
      %821 = vmatprep.mubr.f32.mxu0 0.0
      %822 = vmatmul.mubr.f32.gmra.mrb[0].mxu0 %v755
      %v823 = vpop.f32.mrb[0].mxu0
      %v824 = vadd.f32 0.0, %v823
      %v825 = vpop.f32.mrb[0].mxu0
      %826 = vdwg.mxu0
      %v828 = vsel %vm250, %v607, 0
      %830 = vmatprep.subr.mxu0 0.0
      %831 = vmatpush1.msra.mxu0 %v249
      %832 = vmatprep.subr.mxu0 0.0
      %833 = vmatpush1.msra.mxu0 0.0
      %834 = vmatprep.subr.mxu0 0.0
      %835 = vmatpush1.msra.mxu0 0.0
      %836 = vmatprep.subr.mxu0 0.0
      %837 = vmatpush1.msra.mxu0 0.0
      %838 = vmatprep.subr.mxu0 0.0
      %839 = vmatpush1.msra.mxu0 0.0
      %840 = vmatprep.subr.mxu0 0.0
      %841 = vmatpush1.msra.mxu0 0.0
      %842 = vmatprep.subr.mxu0 0.0
      %843 = vmatpush1.msra.mxu0 0.0
      %844 = vmatprep.subr.mxu0 0.0
      %845 = vmatpush1.msra.mxu0 0.0
      %846 = vmatprep.subr.mxu0 0.0
      %847 = vmatpush1.msra.mxu0 0.0
      %848 = vmatprep.subr.mxu0 0.0
      %849 = vmatpush1.msra.mxu0 0.0
      %850 = vmatprep.subr.mxu0 0.0
      %851 = vmatpush1.msra.mxu0 0.0
      %852 = vmatprep.subr.mxu0 0.0
      %853 = vmatpush1.msra.mxu0 0.0
      %854 = vmatprep.subr.mxu0 0.0
      %855 = vmatpush1.msra.mxu0 0.0
      %856 = vmatprep.subr.mxu0 0.0
      %857 = vmatpush1.msra.mxu0 0.0
      %858 = vmatprep.subr.mxu0 0.0
      %859 = vmatpush1.msra.mxu0 0.0
      %860 = vmatprep.subr.mxu0 0.0
      %861 = vmatpush1.msra.mxu0 0.0
      %862 = vmatprep.subr.mxu0 0.0
      %863 = vmatpush1.msra.mxu0 0.0
      %864 = vmatprep.subr.mxu0 0.0
      %865 = vmatpush1.msra.mxu0 0.0
      %866 = vmatprep.subr.mxu0 0.0
      %867 = vmatpush1.msra.mxu0 0.0
      %868 = vmatprep.subr.mxu0 0.0
      %869 = vmatpush1.msra.mxu0 0.0
      %870 = vmatprep.subr.mxu0 0.0
      %871 = vmatpush1.msra.mxu0 0.0
      %872 = vmatprep.subr.mxu0 0.0
      %873 = vmatpush1.msra.mxu0 0.0
      %874 = vmatprep.subr.mxu0 0.0
      %875 = vmatpush1.msra.mxu0 0.0
      %876 = vmatprep.subr.mxu0 0.0
      %877 = vmatpush1.msra.mxu0 0.0
      %878 = vmatprep.subr.mxu0 0.0
      %879 = vmatpush1.msra.mxu0 0.0
      %880 = vmatprep.subr.mxu0 0.0
      %881 = vmatpush1.msra.mxu0 0.0
      %882 = vmatprep.subr.mxu0 0.0
      %883 = vmatpush1.msra.mxu0 0.0
      %884 = vmatprep.subr.mxu0 0.0
      %885 = vmatpush1.msra.mxu0 0.0
      %886 = vmatprep.subr.mxu0 0.0
      %887 = vmatpush1.msra.mxu0 0.0
      %888 = vmatprep.subr.mxu0 0.0
      %889 = vmatpush1.msra.mxu0 0.0
      %890 = vmatprep.subr.mxu0 0.0
      %891 = vmatpush1.msra.mxu0 0.0
      %892 = vmatprep.subr.mxu0 0.0
      %893 = vmatpush1.msra.mxu0 0.0
      %894 = vmatprep.mubr.f32.mxu0 0.0
      %895 = vmatmul.mubr.f32.gmra.mrb[0].mxu0 %v828
      %v896 = vpop.f32.mrb[0].mxu0
      %v897 = vadd.f32 0.0, %v896
      %v898 = vpop.f32.mrb[0].mxu0
      %899 = vdwg.mxu0
      %900 = vst.msk [vmem:[%s237] sm:$0xff] %vm250, %v678
      %901 = vst.msk [vmem:[%s237 + $0x8] sm:$0xff] %vm250, %v751
      %902 = vst.msk [vmem:[%s237 + $0x10] sm:$0xff] %vm250, %v824
      %903 = vst.msk [vmem:[%s237 + $0x18] sm:$0xff] %vm250, %v897
      %p904 = scmp.lt.s32.totalorder %s15, 1
      %s905 = scalar_select %p904, %s15, 1
      %s906 = smul.addr %s905, 4
      %s907 = smul.addr %s906, 8
      %s908 = scalar_lea.vmem %s4, %s907
      // Predicated region
      $region37: #{transformer_forward.12} parent=35 // pred_check
        %p909 = pneg %p132
      $region38: #{transformer_forward.12} parent=35 // pred_check_branch
        %911 = sbr.rel (%p909) target = $region40
      $region39: #{transformer_forward.12} parent=35 // pred_region
        _
      $region40: #{transformer_forward.12} parent=35 // pred_fallthru
        _
    $region36: #{transformer_forward.12} parent=5 // pred_fallthru
      _
    %p912 = scmp.le.s32.totalorder 2, %s10
    // Predicated region
    $region41: #{transformer_forward.12} parent=5 // pred_check
      %p913 = pneg %p912
    $region42: #{transformer_forward.12} parent=5 // pred_check_branch
      %915 = sbr.rel (%p913) target = $region44
    $region43: #{transformer_forward.12} parent=5 // pred_region
      %s916 = ssub.s32 %s10, 2
      // Predicated region
      $region45: #{transformer_forward.12} parent=43 // pred_check
        %p917 = pneg %p138
      $region46: #{transformer_forward.12} parent=43 // pred_check_branch
        %919 = sbr.rel (%p917) target = $region48
      $region47: #{transformer_forward.12} parent=43 // pred_region
        %p920 = scmp.lt.s32.totalorder %s16, 1
        %s921 = scalar_select %p920, %s16, 1
        %s922 = smul.addr %s921, 4
        %s923 = smul.addr %s922, 8
        %s924 = scalar_lea.vmem %s4, %s923
      $region48: #{transformer_forward.12} parent=43 // pred_fallthru
        _
    $region44: #{transformer_forward.12} parent=5 // pred_fallthru
      _
  $region6: #{transformer_forward.12} parent=0 // loop_footer
    %s14 = sadd.s32 1, %s10
  $region7: #{transformer_forward.12} parent=0 // loop_footer_branch
    %9 = sbr.rel target = $region3
  $region8: #{transformer_forward.12} parent=0 // loop_exit
    _

// kernel: transformer_forward.19
$region0: #{transformer_forward.19}
  #allocation0 [shape = 'u32[]', space=smem, size = 0x4, offset = 0x4, fixed_abs, tag = 'smem constant byte address 0x4 - core index']
  #allocation1 [shape = 'u32[144,128]{1,0:T(1,128)}', space=vmem, size = 0x12000, scoped, tag = 'internal scratch']
  #allocation2 [shape = 'f32[16,128]{1,0:T(8,128)}', space=vmem, size = 0x2000, scoped, tag = 'scratch operand']
  %s0 = inlined_call_operand.vmem [shape: f32[16,128], index: 0, kind: input, shape index: {}]
  %s1 = inlined_call_operand.vmem [shape: f32[128,128], index: 1, kind: input, shape index: {}]
  %s2 = inlined_call_operand.vmem [shape: f32[1,128], index: 2, kind: input, shape index: {}]
  %s3 = inlined_call_operand.hbm [shape: f32[16,128], index: 3, kind: output, shape index: {}]
  %s4 = sld [smem:[#allocation0]]
  $region30: #{transformer_forward.19} parent=0
    _
  %s6 = ssub.s32 1, %s4
  %s7 = scalar_select 0, %s6, %s4
  $region1: #{transformer_forward.19} parent=0
    #allocation3 [shape = 'u8[8192]{0}', space=vmem, size = 0x2000, scoped, tag = 'output window, operand 0, single buffered']
    #allocation4 [shape = 's32[1]{0}', space=sflag, size = 0x4, scoped, tag = 'scoped memory for transformer_forward.19']
    %8 = vsyncpa [#allocation4], 0
    // Predicated region
    $region2: #{transformer_forward.19} parent=1 // pred_check
      _
    $region3: #{transformer_forward.19} parent=1 // pred_check_branch
      %10 = sbr.rel (0) target = $region5
    $region4: #{transformer_forward.19} parent=1 // pred_region
      _
    $region5: #{transformer_forward.19} parent=1 // pred_fallthru
      _
    // Predicated region
    $region6: #{transformer_forward.19} parent=1 // pred_check
      _
    $region7: #{transformer_forward.19} parent=1 // pred_check_branch
      %12 = sbr.rel (0) target = $region9
    $region8: #{transformer_forward.19} parent=1 // pred_region
      _
    $region9: #{transformer_forward.19} parent=1 // pred_fallthru
      _
    // Predicated region
    $region10: #{transformer_forward.19} parent=1 // pred_check
      _
    $region11: #{transformer_forward.19} parent=1 // pred_check_branch
      %14 = sbr.rel (0) target = $region13
    $region12: #{transformer_forward.19} parent=1 // pred_region
      _
    $region13: #{transformer_forward.19} parent=1 // pred_fallthru
      _
    %p15 = scmp.eq.s32.totalorder 0, 0
    // Predicated region
    $region14: #{transformer_forward.19} parent=1 // pred_check
      %p16 = pneg %p15
    $region15: #{transformer_forward.19} parent=1 // pred_check_branch
      %18 = sbr.rel (%p16) target = $region17
    $region16: #{transformer_forward.19} parent=1 // pred_region
      %19 = vst [vmem:[#allocation2] sm:$0xff] 0.0
      %20 = vst [vmem:[#allocation2 + $0x8] sm:$0xff] 0.0
    $region17: #{transformer_forward.19} parent=1 // pred_fallthru
      _
    %v21 = vld [vmem:[#allocation2] sm:$0xff]
    %v22 = vld [vmem:[#allocation2 + $0x8] sm:$0xff]
    %v23 = vld [vmem:[%s0] sm:$0xff]
    %v24 = vld [vmem:[%s0 + $0x8] sm:$0xff]
    %v25 = vld [vmem:[%s1] sm:$0xff]
    %v26 = vld [vmem:[%s1 + $0x8] sm:$0xff]
    %v27 = vld [vmem:[%s1 + $0x10] sm:$0xff]
    %v28 = vld [vmem:[%s1 + $0x18] sm:$0xff]
    %v29 = vld [vmem:[%s1 + $0x20] sm:$0xff]
    %v30 = vld [vmem:[%s1 + $0x28] sm:$0xff]
    %v31 = vld [vmem:[%s1 + $0x30] sm:$0xff]
    %v32 = vld [vmem:[%s1 + $0x38] sm:$0xff]
    %v33 = vld [vmem:[%s1 + $0x40] sm:$0xff]
    %v34 = vld [vmem:[%s1 + $0x48] sm:$0xff]
    %v35 = vld [vmem:[%s1 + $0x50] sm:$0xff]
    %v36 = vld [vmem:[%s1 + $0x58] sm:$0xff]
    %v37 = vld [vmem:[%s1 + $0x60] sm:$0xff]
    %v38 = vld [vmem:[%s1 + $0x68] sm:$0xff]
    %v39 = vld [vmem:[%s1 + $0x70] sm:$0xff]
    %v40 = vld [vmem:[%s1 + $0x78] sm:$0xff]
    %41 = vmatprep.subr.mxu0 0.0
    %42 = vmatpush1.msra.mxu0 %v25
    %43 = vmatprep.subr.mxu0 0.0
    %44 = vmatpush1.msra.mxu0 %v26
    %45 = vmatprep.subr.mxu0 0.0
    %46 = vmatpush1.msra.mxu0 %v27
    %47 = vmatprep.subr.mxu0 0.0
    %48 = vmatpush1.msra.mxu0 %v28
    %49 = vmatprep.subr.mxu0 0.0
    %50 = vmatpush1.msra.mxu0 %v29
    %51 = vmatprep.subr.mxu0 0.0
    %52 = vmatpush1.msra.mxu0 %v30
    %53 = vmatprep.subr.mxu0 0.0
    %54 = vmatpush1.msra.mxu0 %v31
    %55 = vmatprep.subr.mxu0 0.0
    %56 = vmatpush1.msra.mxu0 %v32
    %57 = vmatprep.subr.mxu0 0.0
    %58 = vmatpush1.msra.mxu0 %v33
    %59 = vmatprep.subr.mxu0 0.0
    %60 = vmatpush1.msra.mxu0 %v34
    %61 = vmatprep.subr.mxu0 0.0
    %62 = vmatpush1.msra.mxu0 %v35
    %63 = vmatprep.subr.mxu0 0.0
    %64 = vmatpush1.msra.mxu0 %v36
    %65 = vmatprep.subr.mxu0 0.0
    %66 = vmatpush1.msra.mxu0 %v37
    %67 = vmatprep.subr.mxu0 0.0
    %68 = vmatpush1.msra.mxu0 %v38
    %69 = vmatprep.subr.mxu0 0.0
    %70 = vmatpush1.msra.mxu0 %v39
    %71 = vmatprep.subr.mxu0 0.0
    %72 = vmatpush1.msra.mxu0 %v40
    %73 = vmatprep.subr.mxu0 0.0
    %74 = vmatpush1.msra.mxu0 0.0
    %75 = vmatprep.subr.mxu0 0.0
    %76 = vmatpush1.msra.mxu0 0.0
    %77 = vmatprep.subr.mxu0 0.0
    %78 = vmatpush1.msra.mxu0 0.0
    %79 = vmatprep.subr.mxu0 0.0
    %80 = vmatpush1.msra.mxu0 0.0
    %81 = vmatprep.subr.mxu0 0.0
    %82 = vmatpush1.msra.mxu0 0.0
    %83 = vmatprep.subr.mxu0 0.0
    %84 = vmatpush1.msra.mxu0 0.0
    %85 = vmatprep.subr.mxu0 0.0
    %86 = vmatpush1.msra.mxu0 0.0
    %87 = vmatprep.subr.mxu0 0.0
    %88 = vmatpush1.msra.mxu0 0.0
    %89 = vmatprep.subr.mxu0 0.0
    %90 = vmatpush1.msra.mxu0 0.0
    %91 = vmatprep.subr.mxu0 0.0
    %92 = vmatpush1.msra.mxu0 0.0
    %93 = vmatprep.subr.mxu0 0.0
    %94 = vmatpush1.msra.mxu0 0.0
    %95 = vmatprep.subr.mxu0 0.0
    %96 = vmatpush1.msra.mxu0 0.0
    %97 = vmatprep.subr.mxu0 0.0
    %98 = vmatpush1.msra.mxu0 0.0
    %99 = vmatprep.subr.mxu0 0.0
    %100 = vmatpush1.msra.mxu0 0.0
    %101 = vmatprep.subr.mxu0 0.0
    %102 = vmatpush1.msra.mxu0 0.0
    %103 = vmatprep.subr.mxu0 0.0
    %104 = vmatpush1.msra.mxu0 0.0
    %105 = vmatprep.mubr.f32.mxu0 0.0
    %106 = vmatmul.mubr.f32.gmra.mrb[0].mxu0 %v23
    %v107 = vpop.f32.mrb[0].mxu0
    %v108 = vadd.f32 0.0, %v107
    %v109 = vpop.f32.mrb[0].mxu0
    %110 = vmatprep.mubr.f32.mxu0 0.0
    %111 = vmatmul.mubr.f32.gmra.mrb[0].mxu0 %v24
    %v112 = vpop.f32.mrb[0].mxu0
    %v113 = vadd.f32 0.0, %v112
    %v114 = vpop.f32.mrb[0].mxu0
    %115 = vdwg.mxu0
    %v116 = vadd.f32 %v21, %v108
    %v117 = vadd.f32 %v22, %v113
    %118 = vst [vmem:[#allocation2] sm:$0xff] %v116
    %119 = vst [vmem:[#allocation2 + $0x8] sm:$0xff] %v117
    // Predicated region
    $region18: #{transformer_forward.19} parent=1 // pred_check
      %p120 = pneg %p15
    $region19: #{transformer_forward.19} parent=1 // pred_check_branch
      %122 = sbr.rel (%p120) target = $region21
    $region20: #{transformer_forward.19} parent=1 // pred_region
      %v123 = vld [vmem:[#allocation2] sm:$0xff]
      %v124 = vld [vmem:[#allocation2 + $0x8] sm:$0xff]
      %v125 = vld [vmem:[%s2] sm:$0x1]
      %v127 = vlaneseq
      %v128 = vshrl.u32 %v127, 7
      %v129 = vsub.s32 0, %v128
      %v130 = vrot.slane %v125, %v129
      %v132 = vadd.f32 %v123, %v130
      %v133 = vadd.f32 %v124, %v130
      %134 = vst [vmem:[#allocation3] sm:$0xff] %v132
      %135 = vst [vmem:[#allocation3 + $0x8] sm:$0xff] %v133
    $region21: #{transformer_forward.19} parent=1 // pred_fallthru
      _
    // Predicated region
    $region22: #{transformer_forward.19} parent=1 // pred_check
      _
    $region23: #{transformer_forward.19} parent=1 // pred_check_branch
      %137 = sbr.rel (0) target = $region25
    $region24: #{transformer_forward.19} parent=1 // pred_region
      %s139 = ssub.s32 256, 256
      %140 = vsyncadd [#allocation4], %s139
      %s141 = sshll.u32 [#allocation3], 4
      %s142 = int_to_ptr.vmem [resolvable:$true] %s141
      %147 = dma.vmem_to_hbm [thread:$0]  %s142, 256, %s3, [#allocation4], 128, 128, 8
    $region25: #{transformer_forward.19} parent=1 // pred_fallthru
      _
    // Predicated region
    $region26: #{transformer_forward.19} parent=1 // pred_check
      _
    $region27: #{transformer_forward.19} parent=1 // pred_check_branch
      %149 = sbr.rel (0) target = $region29
    $region28: #{transformer_forward.19} parent=1 // pred_region
      %150 = dma.done [#allocation4], 256
    $region29: #{transformer_forward.19} parent=1 // pred_fallthru
      _
    %151 = vsyncpa [#allocation4], 1

// kernel: transformer_forward.14
$region0: #{transformer_forward.14}
  #allocation0 [shape = 'u32[]', space=smem, size = 0x4, offset = 0x4, fixed_abs, tag = 'smem constant byte address 0x4 - core index']
  #allocation1 [shape = 'u32[144,128]{1,0:T(1,128)}', space=vmem, size = 0x12000, scoped, tag = 'internal scratch']
  #allocation2 [shape = 'f32[16,32]{1,0:T(8,128)}', space=vmem, size = 0x2000, scoped, tag = 'scratch operand']
  %s0 = inlined_call_operand.vmem [shape: f32[16,32], index: 0, kind: input, shape index: {}, may-alias: {0,5}]
  %s1 = inlined_call_operand.vmem [shape: f32[32,128], index: 1, kind: input, shape index: {}]
  %s2 = inlined_call_operand.vmem [shape: f32[1,128], index: 2, kind: input, shape index: {}]
  %s3 = inlined_call_operand.vmem [shape: f32[128,32], index: 3, kind: input, shape index: {}]
  %s4 = inlined_call_operand.vmem [shape: f32[1,32], index: 4, kind: input, shape index: {}]
  %s5 = inlined_call_operand.vmem [shape: f32[16,32], index: 5, kind: input, shape index: {}, may-alias: {0,5}]
  %s6 = inlined_call_operand.vmem [shape: f32[1,32], index: 6, kind: input, shape index: {}]
  %s7 = inlined_call_operand.vmem [shape: f32[1,32], index: 7, kind: input, shape index: {}]
  %s8 = inlined_call_operand.vmem [shape: f32[16,32], index: 8, kind: output, shape index: {}]
  %s9 = sld [smem:[#allocation0]]
  $region50: #{transformer_forward.14} parent=0
    _
  %s11 = ssub.s32 1, %s9
  %s12 = scalar_select 0, %s11, %s9
  // Predicated region
  $region2: #{transformer_forward.14} parent=0 // pred_check
    _
  $region3: #{transformer_forward.14} parent=0 // pred_check_branch
    %14 = sbr.rel (0) target = $region5
  $region4: #{transformer_forward.14} parent=0 // pred_region
    _
  $region5: #{transformer_forward.14} parent=0 // pred_fallthru
    _
  // Predicated region
  $region6: #{transformer_forward.14} parent=0 // pred_check
    _
  $region7: #{transformer_forward.14} parent=0 // pred_check_branch
    %16 = sbr.rel (0) target = $region9
  $region8: #{transformer_forward.14} parent=0 // pred_region
    _
  $region9: #{transformer_forward.14} parent=0 // pred_fallthru
    _
  // Predicated region
  $region10: #{transformer_forward.14} parent=0 // pred_check
    _
  $region11: #{transformer_forward.14} parent=0 // pred_check_branch
    %18 = sbr.rel (0) target = $region13
  $region12: #{transformer_forward.14} parent=0 // pred_region
    _
  $region13: #{transformer_forward.14} parent=0 // pred_fallthru
    _
  // Predicated region
  $region14: #{transformer_forward.14} parent=0 // pred_check
    _
  $region15: #{transformer_forward.14} parent=0 // pred_check_branch
    %20 = sbr.rel (0) target = $region17
  $region16: #{transformer_forward.14} parent=0 // pred_region
    _
  $region17: #{transformer_forward.14} parent=0 // pred_fallthru
    _
  // Predicated region
  $region18: #{transformer_forward.14} parent=0 // pred_check
    _
  $region19: #{transformer_forward.14} parent=0 // pred_check_branch
    %22 = sbr.rel (0) target = $region21
  $region20: #{transformer_forward.14} parent=0 // pred_region
    _
  $region21: #{transformer_forward.14} parent=0 // pred_fallthru
    _
  // Predicated region
  $region22: #{transformer_forward.14} parent=0 // pred_check
    _
  $region23: #{transformer_forward.14} parent=0 // pred_check_branch
    %24 = sbr.rel (0) target = $region25
  $region24: #{transformer_forward.14} parent=0 // pred_region
    _
  $region25: #{transformer_forward.14} parent=0 // pred_fallthru
    _
  // Predicated region
  $region26: #{transformer_forward.14} parent=0 // pred_check
    _
  $region27: #{transformer_forward.14} parent=0 // pred_check_branch
    %26 = sbr.rel (0) target = $region29
  $region28: #{transformer_forward.14} parent=0 // pred_region
    _
  $region29: #{transformer_forward.14} parent=0 // pred_fallthru
    _
  // Predicated region
  $region30: #{transformer_forward.14} parent=0 // pred_check
    _
  $region31: #{transformer_forward.14} parent=0 // pred_check_branch
    %28 = sbr.rel (0) target = $region33
  $region32: #{transformer_forward.14} parent=0 // pred_region
    _
  $region33: #{transformer_forward.14} parent=0 // pred_fallthru
    _
  %p29 = scmp.eq.s32.totalorder 0, 0
  // Predicated region
  $region34: #{transformer_forward.14} parent=0 // pred_check
    %p30 = pneg %p29
  $region35: #{transformer_forward.14} parent=0 // pred_check_branch
    %32 = sbr.rel (%p30) target = $region37
  $region36: #{transformer_forward.14} parent=0 // pred_region
    %vm33 = vcmask 261120
    %34 = vst.msk [vmem:[#allocation2] sm:$0xff] %vm33, 0.0
    %35 = vst.msk [vmem:[#allocation2 + $0x8] sm:$0xff] %vm33, 0.0
  $region37: #{transformer_forward.14} parent=0 // pred_fallthru
    _
  %v36 = vld [vmem:[%s0] sm:$0xff]
  %v37 = vld [vmem:[%s0 + $0x8] sm:$0xff]
  %v38 = vld [vmem:[%s1] sm:$0xff]
  %v39 = vld [vmem:[%s1 + $0x8] sm:$0xff]
  %v40 = vld [vmem:[%s1 + $0x10] sm:$0xff]
  %v41 = vld [vmem:[%s1 + $0x18] sm:$0xff]
  %v42 = vld [vmem:[%s2] sm:$0x1]
  %v44 = vlaneseq
  %v45 = vshrl.u32 %v44, 7
  %v46 = vsub.s32 0, %v45
  %v47 = vrot.slane %v42, %v46
  %vm49 = vcmask 261120
  %v51 = vsel %vm49, %v36, 0
  %v54 = vsel %vm49, %v37, 0
  %56 = vmatprep.subr.mxu0 0.0
  %57 = vmatpush1.msra.mxu0 %v38
  %58 = vmatprep.subr.mxu0 0.0
  %59 = vmatpush1.msra.mxu0 %v39
  %60 = vmatprep.subr.mxu0 0.0
  %61 = vmatpush1.msra.mxu0 %v40
  %62 = vmatprep.subr.mxu0 0.0
  %63 = vmatpush1.msra.mxu0 %v41
  %64 = vmatprep.subr.mxu0 0.0
  %65 = vmatpush1.msra.mxu0 0.0
  %66 = vmatprep.subr.mxu0 0.0
  %67 = vmatpush1.msra.mxu0 0.0
  %68 = vmatprep.subr.mxu0 0.0
  %69 = vmatpush1.msra.mxu0 0.0
  %70 = vmatprep.subr.mxu0 0.0
  %71 = vmatpush1.msra.mxu0 0.0
  %72 = vmatprep.subr.mxu0 0.0
  %73 = vmatpush1.msra.mxu0 0.0
  %74 = vmatprep.subr.mxu0 0.0
  %75 = vmatpush1.msra.mxu0 0.0
  %76 = vmatprep.subr.mxu0 0.0
  %77 = vmatpush1.msra.mxu0 0.0
  %78 = vmatprep.subr.mxu0 0.0
  %79 = vmatpush1.msra.mxu0 0.0
  %80 = vmatprep.subr.mxu0 0.0
  %81 = vmatpush1.msra.mxu0 0.0
  %82 = vmatprep.subr.mxu0 0.0
  %83 = vmatpush1.msra.mxu0 0.0
  %84 = vmatprep.subr.mxu0 0.0
  %85 = vmatpush1.msra.mxu0 0.0
  %86 = vmatprep.subr.mxu0 0.0
  %87 = vmatpush1.msra.mxu0 0.0
  %88 = vmatprep.subr.mxu0 0.0
  %89 = vmatpush1.msra.mxu0 0.0
  %90 = vmatprep.subr.mxu0 0.0
  %91 = vmatpush1.msra.mxu0 0.0
  %92 = vmatprep.subr.mxu0 0.0
  %93 = vmatpush1.msra.mxu0 0.0
  %94 = vmatprep.subr.mxu0 0.0
  %95 = vmatpush1.msra.mxu0 0.0
  %96 = vmatprep.subr.mxu0 0.0
  %97 = vmatpush1.msra.mxu0 0.0
  %98 = vmatprep.subr.mxu0 0.0
  %99 = vmatpush1.msra.mxu0 0.0
  %100 = vmatprep.subr.mxu0 0.0
  %101 = vmatpush1.msra.mxu0 0.0
  %102 = vmatprep.subr.mxu0 0.0
  %103 = vmatpush1.msra.mxu0 0.0
  %104 = vmatprep.subr.mxu0 0.0
  %105 = vmatpush1.msra.mxu0 0.0
  %106 = vmatprep.subr.mxu0 0.0
  %107 = vmatpush1.msra.mxu0 0.0
  %108 = vmatprep.subr.mxu0 0.0
  %109 = vmatpush1.msra.mxu0 0.0
  %110 = vmatprep.subr.mxu0 0.0
  %111 = vmatpush1.msra.mxu0 0.0
  %112 = vmatprep.subr.mxu0 0.0
  %113 = vmatpush1.msra.mxu0 0.0
  %114 = vmatprep.subr.mxu0 0.0
  %115 = vmatpush1.msra.mxu0 0.0
  %116 = vmatprep.subr.mxu0 0.0
  %117 = vmatpush1.msra.mxu0 0.0
  %118 = vmatprep.subr.mxu0 0.0
  %119 = vmatpush1.msra.mxu0 0.0
  %120 = vmatprep.mubr.f32.mxu0 0.0
  %121 = vmatmul.mubr.f32.gmra.mrb[0].mxu0 %v51
  %v122 = vpop.f32.mrb[0].mxu0
  %v123 = vadd.f32 %v47, %v122
  %v124 = vpop.f32.mrb[0].mxu0
  %125 = vmatprep.mubr.f32.mxu0 0.0
  %126 = vmatmul.mubr.f32.gmra.mrb[0].mxu0 %v54
  %v127 = vpop.f32.mrb[0].mxu0
  %v128 = vadd.f32 %v47, %v127
  %v129 = vpop.f32.mrb[0].mxu0
  %130 = vdwg.mxu0
  %v131 = vmax.f32 %v123, 0.0
  %v132 = vmax.f32 %v128, 0.0
  %v133 = vld [vmem:[#allocation2] sm:$0xff]
  %v134 = vld [vmem:[#allocation2 + $0x8] sm:$0xff]
  %v135 = vld [vmem:[%s3] sm:$0xff]
  %v136 = vld [vmem:[%s3 + $0x8] sm:$0xff]
  %v137 = vld [vmem:[%s3 + $0x10] sm:$0xff]
  %v138 = vld [vmem:[%s3 + $0x18] sm:$0xff]
  %v139 = vld [vmem:[%s3 + $0x20] sm:$0xff]
  %v140 = vld [vmem:[%s3 + $0x28] sm:$0xff]
  %v141 = vld [vmem:[%s3 + $0x30] sm:$0xff]
  %v142 = vld [vmem:[%s3 + $0x38] sm:$0xff]
  %v143 = vld [vmem:[%s3 + $0x40] sm:$0xff]
  %v144 = vld [vmem:[%s3 + $0x48] sm:$0xff]
  %v145 = vld [vmem:[%s3 + $0x50] sm:$0xff]
  %v146 = vld [vmem:[%s3 + $0x58] sm:$0xff]
  %v147 = vld [vmem:[%s3 + $0x60] sm:$0xff]
  %v148 = vld [vmem:[%s3 + $0x68] sm:$0xff]
  %v149 = vld [vmem:[%s3 + $0x70] sm:$0xff]
  %v150 = vld [vmem:[%s3 + $0x78] sm:$0xff]
  %151 = vmatprep.subr.mxu0 0.0
  %152 = vmatpush1.msra.mxu0 %v135
  %153 = vmatprep.subr.mxu0 0.0
  %154 = vmatpush1.msra.mxu0 %v136
  %155 = vmatprep.subr.mxu0 0.0
  %156 = vmatpush1.msra.mxu0 %v137
  %157 = vmatprep.subr.mxu0 0.0
  %158 = vmatpush1.msra.mxu0 %v138
  %159 = vmatprep.subr.mxu0 0.0
  %160 = vmatpush1.msra.mxu0 %v139
  %161 = vmatprep.subr.mxu0 0.0
  %162 = vmatpush1.msra.mxu0 %v140
  %163 = vmatprep.subr.mxu0 0.0
  %164 = vmatpush1.msra.mxu0 %v141
  %165 = vmatprep.subr.mxu0 0.0
  %166 = vmatpush1.msra.mxu0 %v142
  %167 = vmatprep.subr.mxu0 0.0
  %168 = vmatpush1.msra.mxu0 %v143
  %169 = vmatprep.subr.mxu0 0.0
  %170 = vmatpush1.msra.mxu0 %v144
  %171 = vmatprep.subr.mxu0 0.0
  %172 = vmatpush1.msra.mxu0 %v145
  %173 = vmatprep.subr.mxu0 0.0
  %174 = vmatpush1.msra.mxu0 %v146
  %175 = vmatprep.subr.mxu0 0.0
  %176 = vmatpush1.msra.mxu0 %v147
  %177 = vmatprep.subr.mxu0 0.0
  %178 = vmatpush1.msra.mxu0 %v148
  %179 = vmatprep.subr.mxu0 0.0
  %180 = vmatpush1.msra.mxu0 %v149
  %181 = vmatprep.subr.mxu0 0.0
  %182 = vmatpush1.msra.mxu0 %v150
  %183 = vmatprep.subr.mxu0 0.0
  %184 = vmatpush1.msra.mxu0 0.0
  %185 = vmatprep.subr.mxu0 0.0
  %186 = vmatpush1.msra.mxu0 0.0
  %187 = vmatprep.subr.mxu0 0.0
  %188 = vmatpush1.msra.mxu0 0.0
  %189 = vmatprep.subr.mxu0 0.0
  %190 = vmatpush1.msra.mxu0 0.0
  %191 = vmatprep.subr.mxu0 0.0
  %192 = vmatpush1.msra.mxu0 0.0
  %193 = vmatprep.subr.mxu0 0.0
  %194 = vmatpush1.msra.mxu0 0.0
  %195 = vmatprep.subr.mxu0 0.0
  %196 = vmatpush1.msra.mxu0 0.0
  %197 = vmatprep.subr.mxu0 0.0
  %198 = vmatpush1.msra.mxu0 0.0
  %199 = vmatprep.subr.mxu0 0.0
  %200 = vmatpush1.msra.mxu0 0.0
  %201 = vmatprep.subr.mxu0 0.0
  %202 = vmatpush1.msra.mxu0 0.0
  %203 = vmatprep.subr.mxu0 0.0
  %204 = vmatpush1.msra.mxu0 0.0
  %205 = vmatprep.subr.mxu0 0.0
  %206 = vmatpush1.msra.mxu0 0.0
  %207 = vmatprep.subr.mxu0 0.0
  %208 = vmatpush1.msra.mxu0 0.0
  %209 = vmatprep.subr.mxu0 0.0
  %210 = vmatpush1.msra.mxu0 0.0
  %211 = vmatprep.subr.mxu0 0.0
  %212 = vmatpush1.msra.mxu0 0.0
  %213 = vmatprep.subr.mxu0 0.0
  %214 = vmatpush1.msra.mxu0 0.0
  %215 = vmatprep.mubr.f32.mxu0 0.0
  %216 = vmatmul.mubr.f32.gmra.mrb[0].mxu0 %v131
  %v217 = vpop.f32.mrb[0].mxu0
  %v218 = vadd.f32 0.0, %v217
  %v219 = vpop.f32.mrb[0].mxu0
  %220 = vmatprep.mubr.f32.mxu0 0.0
  %221 = vmatmul.mubr.f32.gmra.mrb[0].mxu0 %v132
  %v222 = vpop.f32.mrb[0].mxu0
  %v223 = vadd.f32 0.0, %v222
  %v224 = vpop.f32.mrb[0].mxu0
  %225 = vdwg.mxu0
  %v226 = vadd.f32 %v133, %v218
  %v227 = vadd.f32 %v134, %v223
  %228 = vst.msk [vmem:[#allocation2] sm:$0xff] %vm49, %v226
  %229 = vst.msk [vmem:[#allocation2 + $0x8] sm:$0xff] %vm49, %v227
  // Predicated region
  $region38: #{transformer_forward.14} parent=0 // pred_check
    %p230 = pneg %p29
  $region39: #{transformer_forward.14} parent=0 // pred_check_branch
    %232 = sbr.rel (%p230) target = $region41
  $region40: #{transformer_forward.14} parent=0 // pred_region
    %v233 = vld [vmem:[#allocation2] sm:$0xff]
    %v234 = vld [vmem:[#allocation2 + $0x8] sm:$0xff]
    %v235 = vld [vmem:[%s4] sm:$0x1]
    %v237 = vlaneseq
    %v238 = vshrl.u32 %v237, 7
    %v239 = vsub.s32 0, %v238
    %v240 = vrot.slane %v235, %v239
    %v242 = vadd.f32 %v233, %v240
    %v243 = vadd.f32 %v234, %v240
    %v244 = vld [vmem:[%s5] sm:$0xff]
    %v245 = vld [vmem:[%s5 + $0x8] sm:$0xff]
    %v246 = vadd.f32 %v242, %v244
    %v247 = vadd.f32 %v243, %v245
    %v248 = vsel %vm49, %v246, 0.0
    %249 = vadd.xlane.f32.xlu0 %v248
    %v250 = vpop.xlane.xlu0 %249
    %v251 = vsel %vm49, %v247, 0.0
    %252 = vadd.xlane.f32.xlu0 %v251
    %v253 = vpop.xlane.xlu0 %252
    %v254 = vrcp.pop 32.0
    %v255 = vmul.f32 %v250, %v254
    %v256 = vmul.f32 %v253, %v254
    %v257 = vsub.f32 %v246, %v255
    %v258 = vsub.f32 %v247, %v256
    %v259 = vmul.f32 %v257, %v257
    %v260 = vmul.f32 %v258, %v258
    %v261 = vsel %vm49, %v259, 0.0
    %262 = vadd.xlane.f32.xlu0 %v261
    %v263 = vpop.xlane.xlu0 %262
    %v264 = vsel %vm49, %v260, 0.0
    %265 = vadd.xlane.f32.xlu0 %v264
    %v266 = vpop.xlane.xlu0 %265
    %v267 = vmul.f32 %v263, %v254
    %v268 = vmul.f32 %v266, %v254
    %v269 = vadd.f32 %v267, 1e-05
    %v270 = vadd.f32 %v268, 1e-05
    %v271 = vrsqrt.pop %v269
    %v272 = vrsqrt.pop %v270
    %v273 = vmul.f32 %v257, %v271
    %v274 = vmul.f32 %v258, %v272
    %v275 = vld [vmem:[%s6] sm:$0x1]
    %v277 = vlaneseq
    %v278 = vshrl.u32 %v277, 7
    %v279 = vsub.s32 0, %v278
    %v280 = vrot.slane %v275, %v279
    %v282 = vmul.f32 %v273, %v280
    %v283 = vmul.f32 %v274, %v280
    %v284 = vld [vmem:[%s7] sm:$0x1]
    %v286 = vlaneseq
    %v287 = vshrl.u32 %v286, 7
    %v288 = vsub.s32 0, %v287
    %v289 = vrot.slane %v284, %v288
    %v291 = vadd.f32 %v282, %v289
    %v292 = vadd.f32 %v283, %v289
    %293 = vst.msk [vmem:[%s8] sm:$0xff] %vm49, %v291
    %294 = vst.msk [vmem:[%s8 + $0x8] sm:$0xff] %vm49, %v292
  $region41: #{transformer_forward.14} parent=0 // pred_fallthru
    _
  // Predicated region
  $region42: #{transformer_forward.14} parent=0 // pred_check
    _
  $region43: #{transformer_forward.14} parent=0 // pred_check_branch
    %296 = sbr.rel (0) target = $region45
  $region44: #{transformer_forward.14} parent=0 // pred_region
    _
  $region45: #{transformer_forward.14} parent=0 // pred_fallthru
    _
  // Predicated region
  $region46: #{transformer_forward.14} parent=0 // pred_check
    _
  $region47: #{transformer_forward.14} parent=0 // pred_check_branch
    %298 = sbr.rel (0) target = $region49
  $region48: #{transformer_forward.14} parent=0 // pred_region
    _
  $region49: #{transformer_forward.14} parent=0 // pred_fallthru
    _

</llo_original>
